<compile_context>
chip_gen: v5e
topology: v5e:2x2
jax: 0.10.0
libtpu: 0.0.40
codegen_flags: <defaults>
</compile_context>

<pallas_src>
import functools

import jax
import jax.numpy as jnp
from jax.experimental import pallas as pl
from jax.experimental.pallas import tpu as pltpu

BN_EPS = 1e-5
_VMEM_LIMIT = 32 * 1024 * 1024


def _cparams(dim_sem):
    return pltpu.CompilerParams(
        dimension_semantics=dim_sem, vmem_limit_bytes=_VMEM_LIMIT
    )


def _pick_row_tile(m, target):
    """Largest row tile <= target that divides m and keeps the sublane dim aligned."""
    for cand in range(min(target, m), 0, -1):
        if m % cand == 0 and (cand % 16 == 0 or cand == m):
            return cand
    return m


def _pick_h_tile(ho, wo, target):
    """Even output-row chunk dividing ho whose flattened tile stays sublane aligned."""
    for cand in range(min(target, ho), 1, -1):
        if ho % cand == 0 and cand % 2 == 0 and (cand * wo) % 8 == 0:
            return cand
    return ho


# ---------------------------------------------------------------------------
# Kernel 1: ConvTranspose2d(k=2, s=2) with the 4 taps fused along the matmul N
# axis, plus per-tile BatchNorm partial stats (single pass, f32).
#   x_ref  : [tm, Cin]       f32 (cast to bf16 in-register for the MXU)
#   w_ref  : [Cin, 4*Cout]   bf16   column = (kh*2 + kw)*Cout + cout
#   b_ref  : [1, 4*Cout]     f32
#   y_ref  : [tm, 4*Cout]    f32 pre-BN output (bias added)
#   st_ref : [1, 2, 4*Cout]  f32 per-tile [sum ; sum of squares]
# ---------------------------------------------------------------------------
def _upconv_stats_kernel(x_ref, w_ref, b_ref, y_ref, st_ref):
    x = x_ref[...].astype(jnp.bfloat16)
    y = jnp.dot(x, w_ref[...], preferred_element_type=jnp.float32) + b_ref[...]
    y_ref[...] = y
    s = jnp.sum(y, axis=0, keepdims=True)
    sq = jnp.sum(y * y, axis=0, keepdims=True)
    st_ref[0] = jnp.concatenate([s, sq], axis=0)


# ---------------------------------------------------------------------------
# Kernel 2: Conv2d(3x3, s=1, p=1) over concat(skip, up).  The channel concat, the
# im2col patch build, and the 3x3 window extraction all happen on VMEM tiles; the
# row halo comes from a second aligned BlockSpec of the same padded arrays.
#   skm/upm : [1, tho, Wp, C] bf16  main rows of padded skip / up
#   skh/uph : [1, 2,   Wp, C] bf16  two halo rows directly below the chunk
#   w_ref   : [18*C, Cout]    bf16  K = dh*(6C) + dw*(2C) + cin  (cin: skip | up)
#   b_ref   : [1, Cout]       f32
#   y_ref   : [tho*Wo, Cout]  f32 pre-BN output
#   st_ref  : [1, 1, 2, Cout] f32 per-tile [sum ; sum of squares]
# ---------------------------------------------------------------------------
def _conv3x3_stats_kernel(skm_ref, skh_ref, upm_ref, uph_ref, w_ref, b_ref,
                          y_ref, st_ref):
    tho, wp = skm_ref.shape[1], skm_ref.shape[2]
    wo = wp - 2
    # (tho+2)-row window: main rows + halo rows (blocks themselves never overlap)
    sk = jnp.concatenate([skm_ref[0], skh_ref[0]], axis=0)      # [tho+2, Wp, C]
    up = jnp.concatenate([upm_ref[0], uph_ref[0]], axis=0)      # [tho+2, Wp, C]
    cat = jnp.concatenate([sk, up], axis=-1)                    # [tho+2, Wp, 2C]
    # im2col in VMEM -> one big-K MXU op instead of 9 small ones
    cols = jnp.concatenate(
        [cat[:, dw:dw + wo, :] for dw in range(3)], axis=-1)    # [tho+2, Wo, 6C]
    patches = jnp.concatenate(
        [cols[dh:dh + tho] for dh in range(3)], axis=-1)        # [tho, Wo, 18C]
    k = patches.shape[-1]
    patches = patches.reshape(tho * wo, k)
    y = jnp.dot(patches, w_ref[...], preferred_element_type=jnp.float32)
    y = y + b_ref[...]
    y_ref[...] = y
    s = jnp.sum(y, axis=0, keepdims=True)
    sq = jnp.sum(y * y, axis=0, keepdims=True)
    st_ref[0, 0] = jnp.concatenate([s, sq], axis=0)


# ---------------------------------------------------------------------------
# Kernel 3 (BatchNorm phase 2, used twice): y*scale + shift, ReLU, cast to out dtype.
# ---------------------------------------------------------------------------
def _scale_shift_relu_kernel(y_ref, sc_ref, sh_ref, o_ref):
    o_ref[...] = jnp.maximum(
        y_ref[...] * sc_ref[...] + sh_ref[...], 0.0
    ).astype(o_ref.dtype)


def _bn_scale_shift(sums, sumsqs, count, gamma, beta):
    mean = sums / count
    var = jnp.maximum(sumsqs / count - mean * mean, 0.0)
    istd = jax.lax.rsqrt(var + BN_EPS)
    scale = gamma * istd
    shift = beta - mean * scale
    return scale, shift


def decoder_forward(x_nchw, skip_nchw, p, *, m_tile=512, h_tile=8):
    """Pallas implementation of Decoder.forward.  Inputs/outputs are NCHW."""
    x = jnp.transpose(x_nchw, (0, 2, 3, 1)).astype(jnp.float32)        # [B,H,W,Cin]
    skip = jnp.transpose(skip_nchw, (0, 2, 3, 1)).astype(jnp.float32)  # [B,2H,2W,C]
    B, H, W, Cin = x.shape
    C = p["b1"].shape[0]
    Ho, Wo, Wp = 2 * H, 2 * W, 2 * W + 2
    M1, M2 = B * H * W, B * 2 * H * 2 * W

    # weight repack (tiny, layout-only; bf16 for the MXU per review)
    wt_f = jnp.transpose(p["wt"], (0, 2, 3, 1)).reshape(Cin, 4 * C).astype(jnp.bfloat16)
    b1_4 = jnp.tile(p["b1"], 4)[None]                                  # [1, 4C]
    wc_f = jnp.transpose(p["wc"], (2, 3, 1, 0)).reshape(18 * C, C).astype(jnp.bfloat16)
    b2_2 = p["b2"][None]                                               # [1, C]

    # ---- stage 1a: transposed conv (taps fused along N) + BN1 partial stats ----
    tm1 = _pick_row_tile(M1, m_tile)
    n1 = M1 // tm1
    y1, st1 = pl.pallas_call(
        _upconv_stats_kernel,
        grid=(n1,),
        in_specs=[
            pl.BlockSpec((tm1, Cin), lambda i: (i, 0)),
            pl.BlockSpec((Cin, 4 * C), lambda i: (0, 0)),
            pl.BlockSpec((1, 4 * C), lambda i: (0, 0)),
        ],
        out_specs=[
            pl.BlockSpec((tm1, 4 * C), lambda i: (i, 0)),
            pl.BlockSpec((1, 2, 4 * C), lambda i: (i, 0, 0)),
        ],
        out_shape=[
            jax.ShapeDtypeStruct((M1, 4 * C), jnp.float32),
            jax.ShapeDtypeStruct((n1, 2, 4 * C), jnp.float32),
        ],
        compiler_params=_cparams(("parallel",)),
    )(x.reshape(M1, Cin), wt_f, b1_4)

    # ---- stage 1b: fold the 4-tap partials into per-channel stats (tiny XLA),
    #      then apply BN1 + ReLU per tile (emits bf16 for the next MXU) ----
    s1 = jnp.sum(st1, axis=0)                                          # [2, 4C]
    scale1, shift1 = _bn_scale_shift(
        jnp.sum(s1[0].reshape(4, C), axis=0),
        jnp.sum(s1[1].reshape(4, C), axis=0),
        jnp.float32(4 * M1), p["g1"], p["be1"])
    up_bn = pl.pallas_call(
        _scale_shift_relu_kernel,
        grid=(n1,),
        in_specs=[
            pl.BlockSpec((tm1, 4 * C), lambda i: (i, 0)),
            pl.BlockSpec((1, 4 * C), lambda i: (0, 0)),
            pl.BlockSpec((1, 4 * C), lambda i: (0, 0)),
        ],
        out_specs=pl.BlockSpec((tm1, 4 * C), lambda i: (i, 0)),
        out_shape=jax.ShapeDtypeStruct((M1, 4 * C), jnp.bfloat16),
        compiler_params=_cparams(("parallel",)),
    )(y1, jnp.tile(scale1, 4)[None], jnp.tile(shift1, 4)[None])

    # glue (single fused bf16 copy pass): interleave the 2x2 taps into the
    # upsampled spatial grid and zero-pad the 3x3 halo; pad + bf16-cast skip.
    up = (up_bn.reshape(B, H, W, 2, 2, C)
                .transpose(0, 1, 3, 2, 4, 5)
                .reshape(B, Ho, Wo, C))
    up_p = jnp.pad(up, ((0, 0), (1, 1), (1, 1), (0, 0)))               # bf16
    skip_p = jnp.pad(skip.astype(jnp.bfloat16), ((0, 0), (1, 1), (1, 1), (0, 0)))

    # ---- stage 2a: 3x3 conv (in-VMEM concat + im2col, big K) + BN2 partial stats
    tho = _pick_h_tile(Ho, Wo, h_tile)
    nH = Ho // tho
    htho = tho // 2
    y2, st2 = pl.pallas_call(
        _conv3x3_stats_kernel,
        grid=(B, nH),
        in_specs=[
            pl.BlockSpec((1, tho, Wp, C), lambda b, i: (b, i, 0, 0)),
            pl.BlockSpec((1, 2, Wp, C), lambda b, i: (b, (i + 1) * htho, 0, 0)),
            pl.BlockSpec((1, tho, Wp, C), lambda b, i: (b, i, 0, 0)),
            pl.BlockSpec((1, 2, Wp, C), lambda b, i: (b, (i + 1) * htho, 0, 0)),
            pl.BlockSpec((18 * C, C), lambda b, i: (0, 0)),
            pl.BlockSpec((1, C), lambda b, i: (0, 0)),
        ],
        out_specs=[
            pl.BlockSpec((tho * Wo, C), lambda b, i: (b * nH + i, 0)),
            pl.BlockSpec((1, 1, 2, C), lambda b, i: (b, i, 0, 0)),
        ],
        out_shape=[
            jax.ShapeDtypeStruct((M2, C), jnp.float32),
            jax.ShapeDtypeStruct((B, nH, 2, C), jnp.float32),
        ],
        compiler_params=_cparams(("parallel", "parallel")),
    )(skip_p, skip_p, up_p, up_p, wc_f, b2_2)

    # ---- stage 2b: BN2 stats + apply ----
    s2 = jnp.sum(st2, axis=(0, 1))                                     # [2, C]
    scale2, shift2 = _bn_scale_shift(s2[0], s2[1], jnp.float32(M2),
                                     p["g2"], p["be2"])
    tm2 = _pick_row_tile(M2, m_tile)
    n2 = M2 // tm2
    out2d = pl.pallas_call(
        _scale_shift_relu_kernel,
        grid=(n2,),
        in_specs=[
            pl.BlockSpec((tm2, C), lambda i: (i, 0)),
            pl.BlockSpec((1, C), lambda i: (0, 0)),
            pl.BlockSpec((1, C), lambda i: (0, 0)),
        ],
        out_specs=pl.BlockSpec((tm2, C), lambda i: (i, 0)),
        out_shape=jax.ShapeDtypeStruct((M2, C), jnp.float32),
        compiler_params=_cparams(("parallel",)),
    )(y2, scale2[None], shift2[None])

    out = out2d.reshape(B, Ho, Wo, C)
    return jnp.transpose(out, (0, 3, 1, 2))                            # NCHW


# ---------------------------------------------------------------------------
# Pure-JAX reference mirroring the intended kernel math (bf16 MXU inputs with f32
# accumulation; BN in f32, biased variance, eps=1e-5) - no Pallas.
# ---------------------------------------------------------------------------
def _bn_relu_ref(x, gamma, beta):
    mean = jnp.mean(x, axis=(0, 1, 2), keepdims=True)
    var = jnp.mean((x - mean) ** 2, axis=(0, 1, 2), keepdims=True)
    return jnp.maximum((x - mean) * jax.lax.rsqrt(var + BN_EPS) * gamma + beta, 0.0)


def reference_decoder(x_nchw, skip_nchw, p):
    x = jnp.transpose(x_nchw, (0, 2, 3, 1)).astype(jnp.float32)
    skip = jnp.transpose(skip_nchw, (0, 2, 3, 1)).astype(jnp.float32)
    B, H, W, _ = x.shape
    C = p["b1"].shape[0]

    t = jnp.einsum("bhwi,iokl->bhkwlo",
                   x.astype(jnp.bfloat16), p["wt"].astype(jnp.bfloat16),
                   preferred_element_type=jnp.float32)
    up = t.reshape(B, 2 * H, 2 * W, C) + p["b1"]
    up = _bn_relu_ref(up, p["g1"], p["be1"])

    cat = jnp.concatenate([skip, up], axis=-1)                         # (skip, up)
    catp = jnp.pad(cat, ((0, 0), (1, 1), (1, 1), (0, 0))).astype(jnp.bfloat16)
    out = jnp.zeros((B, 2 * H, 2 * W, C), jnp.float32)
    for dh in range(3):
        for dw in range(3):
            out = out + jnp.einsum(
                "bhwc,oc->bhwo",
                catp[:, dh:dh + 2 * H, dw:dw + 2 * W, :],
                p["wc"][:, :, dh, dw].astype(jnp.bfloat16),
                preferred_element_type=jnp.float32)
    out = out + p["b2"]
    out = _bn_relu_ref(out, p["g2"], p["be2"])
    return jnp.transpose(out, (0, 3, 1, 2))


def make_params(key, cin, cout):
    k1, k2, k3, k4 = jax.random.split(key, 4)
    return {
        # PyTorch layouts: ConvTranspose2d [Cin,Cout,2,2]; Conv2d [Cout,2*Cout,3,3]
        "wt": jax.random.normal(k1, (cin, cout, 2, 2), jnp.float32) * 0.1,
        "b1": jax.random.normal(k2, (cout,), jnp.float32) * 0.1,
        "wc": jax.random.normal(k3, (cout, 2 * cout, 3, 3), jnp.float32) * 0.1,
        "b2": jax.random.normal(k4, (cout,), jnp.float32) * 0.1,
        "g1": jnp.ones((cout,), jnp.float32),    # BatchNorm default init
        "be1": jnp.zeros((cout,), jnp.float32),
        "g2": jnp.ones((cout,), jnp.float32),
        "be2": jnp.zeros((cout,), jnp.float32),
    }


if __name__ == "__main__":
    B, Cin, Cout, H, W = 2, 8, 4, 8, 8
    root = jax.random.PRNGKey(0)
    kp, kx, ks = jax.random.split(root, 3)

    params = make_params(kp, Cin, Cout)
    x = jax.random.normal(kx, (B, Cin, H, W), jnp.float32)              # NCHW
    skip = jax.random.normal(ks, (B, Cout, 2 * H, 2 * W), jnp.float32)  # NCHW

    # small tiles so even toy shapes exercise multi-step grids, cross-tile BN
    # partials and the halo path (defaults target realistic sizes).
    fwd = jax.jit(functools.partial(decoder_forward, m_tile=64, h_tile=8))
    out = jax.block_until_ready(fwd(x, skip, params))

    ref = reference_decoder(x, skip, params)
    assert out.shape == (B, Cout, 2 * H, 2 * W), out.shape
    assert bool(jnp.all(jnp.isfinite(out)))
    err = float(jnp.max(jnp.abs(out - ref)))
    assert bool(jnp.allclose(out, ref, atol=2e-2, rtol=2e-2)), err

    print("KERNEL_OK")
</pallas_src>

<mosaic_0001>
module attributes {stable_mosaic.version = 11 : i64} {
  func.func @_upconv_stats_kernel(%arg0: i32, %arg1: memref<64x8xf32, #tpu.memory_space<vmem>>, %arg2: memref<8x16xbf16, #tpu.memory_space<vmem>>, %arg3: memref<1x16xf32, #tpu.memory_space<vmem>>, %arg4: memref<64x16xf32, #tpu.memory_space<vmem>>, %arg5: memref<1x2x16xf32, #tpu.memory_space<vmem>>) attributes {dimension_semantics = [#tpu.dimension_semantics<parallel>], iteration_bounds = array<i64: 2>, scalar_prefetch = 0 : i64, scratch_operands = 0 : i64, tpu.core_type = #tpu.core_type<tc>, window_params = [{transform_indices = @transform_0, window_bounds = array<i64: 64, 8>}, {pipeline_mode = #tpu.pipeline_mode<synchronous>, transform_indices = @transform_1, window_bounds = array<i64: 8, 16>}, {pipeline_mode = #tpu.pipeline_mode<synchronous>, transform_indices = @transform_2, window_bounds = array<i64: 1, 16>}, {transform_indices = @transform_3, window_bounds = array<i64: 64, 16>}, {transform_indices = @transform_4, window_bounds = array<i64: 1, 2, 16>}]} {
    %c0 = arith.constant 0 : index
    %c0_0 = arith.constant 0 : index
    %0 = vector.load %arg1[%c0, %c0_0] : memref<64x8xf32, #tpu.memory_space<vmem>>, vector<64x8xf32>
    %1 = arith.truncf %0 : vector<64x8xf32> to vector<64x8xbf16>
    %c0_1 = arith.constant 0 : index
    %c0_2 = arith.constant 0 : index
    %2 = vector.load %arg2[%c0_1, %c0_2] : memref<8x16xbf16, #tpu.memory_space<vmem>>, vector<8x16xbf16>
    %cst = arith.constant dense<0.000000e+00> : vector<64x16xf32>
    %3 = tpu.matmul %1, %2, %cst {dimension_numbers = #tpu.dot_dimension_numbers<[1], [0], [0], [1], [0, 0, 1, 1], [], []>} : vector<64x8xbf16>, vector<8x16xbf16>, vector<64x16xf32> -> vector<64x16xf32>
    %c0_3 = arith.constant 0 : index
    %c0_4 = arith.constant 0 : index
    %4 = vector.load %arg3[%c0_3, %c0_4] : memref<1x16xf32, #tpu.memory_space<vmem>>, vector<1x16xf32>
    %5 = vector.broadcast %4 : vector<1x16xf32> to vector<64x16xf32>
    %6 = arith.addf %3, %5 : vector<64x16xf32>
    %c0_5 = arith.constant 0 : index
    %c0_6 = arith.constant 0 : index
    %7 = vector.load %arg4[%c0_5, %c0_6] : memref<64x16xf32, #tpu.memory_space<vmem>>, vector<64x16xf32>
    tpu.vector_store %arg4[%c0_5, %c0_6], %6 {strides = array<i32>} : memref<64x16xf32, #tpu.memory_space<vmem>>, vector<64x16xf32>,
    %cst_7 = arith.constant dense<0.000000e+00> : vector<16xf32>
    %8 = vector.multi_reduction <add>, %6, %cst_7 [0] : vector<64x16xf32> to vector<16xf32>
    %9 = vector.shape_cast %8 : vector<16xf32> to vector<1x16xf32>
    %10 = arith.mulf %6, %6 : vector<64x16xf32>
    %cst_8 = arith.constant dense<0.000000e+00> : vector<16xf32>
    %11 = vector.multi_reduction <add>, %10, %cst_8 [0] : vector<64x16xf32> to vector<16xf32>
    %12 = vector.shape_cast %11 : vector<16xf32> to vector<1x16xf32>
    %13 = tpu.concatenate %9, %12 in 0 : vector<1x16xf32>, vector<1x16xf32> -> vector<2x16xf32>
    %c0_9 = arith.constant 0 : index
    %c0_10 = arith.constant 0 : index
    %c0_11 = arith.constant 0 : index
    %14 = vector.load %arg5[%c0_9, %c0_10, %c0_11] : memref<1x2x16xf32, #tpu.memory_space<vmem>>, vector<1x2x16xf32>
    %15 = vector.shape_cast %14 : vector<1x2x16xf32> to vector<2x16xf32>
    %16 = vector.shape_cast %13 : vector<2x16xf32> to vector<1x2x16xf32>
    tpu.vector_store %arg5[%c0_9, %c0_10, %c0_11], %16 {strides = array<i32>} : memref<1x2x16xf32, #tpu.memory_space<vmem>>, vector<1x2x16xf32>,
    return
  }
  func.func @transform_0(%arg0: i32) -> (i32, i32) {
    %c0_i32 = arith.constant 0 : i32
    %c0_i32_0 = arith.constant 0 : i32
    return %arg0, %c0_i32 : i32, i32
  }
  func.func @transform_1(%arg0: i32) -> (i32, i32) {
    %c0_i32 = arith.constant 0 : i32
    %c0_i32_0 = arith.constant 0 : i32
    %c0_i32_1 = arith.constant 0 : i32
    return %c0_i32, %c0_i32_0 : i32, i32
  }
  func.func @transform_2(%arg0: i32) -> (i32, i32) {
    %c0_i32 = arith.constant 0 : i32
    %c0_i32_0 = arith.constant 0 : i32
    %c0_i32_1 = arith.constant 0 : i32
    return %c0_i32, %c0_i32_0 : i32, i32
  }
  func.func @transform_3(%arg0: i32) -> (i32, i32) {
    %c0_i32 = arith.constant 0 : i32
    %c0_i32_0 = arith.constant 0 : i32
    return %arg0, %c0_i32 : i32, i32
  }
  func.func @transform_4(%arg0: i32) -> (i32, i32, i32) {
    %c0_i32 = arith.constant 0 : i32
    %c0_i32_0 = arith.constant 0 : i32
    %c0_i32_1 = arith.constant 0 : i32
    return %arg0, %c0_i32, %c0_i32_0 : i32, i32, i32
  }
}

module attributes {stable_mosaic.version = 11 : i64} {
  func.func @_scale_shift_relu_kernel(%arg0: i32, %arg1: memref<64x16xf32, #tpu.memory_space<vmem>>, %arg2: memref<1x16xf32, #tpu.memory_space<vmem>>, %arg3: memref<1x16xf32, #tpu.memory_space<vmem>>, %arg4: memref<64x16xbf16, #tpu.memory_space<vmem>>) attributes {dimension_semantics = [#tpu.dimension_semantics<parallel>], iteration_bounds = array<i64: 2>, scalar_prefetch = 0 : i64, scratch_operands = 0 : i64, tpu.core_type = #tpu.core_type<tc>, window_params = [{transform_indices = @transform_0, window_bounds = array<i64: 64, 16>}, {pipeline_mode = #tpu.pipeline_mode<synchronous>, transform_indices = @transform_1, window_bounds = array<i64: 1, 16>}, {pipeline_mode = #tpu.pipeline_mode<synchronous>, transform_indices = @transform_2, window_bounds = array<i64: 1, 16>}, {transform_indices = @transform_3, window_bounds = array<i64: 64, 16>}]} {
    %c0 = arith.constant 0 : index
    %c0_0 = arith.constant 0 : index
    %0 = vector.load %arg1[%c0, %c0_0] : memref<64x16xf32, #tpu.memory_space<vmem>>, vector<64x16xf32>
    %c0_1 = arith.constant 0 : index
    %c0_2 = arith.constant 0 : index
    %1 = vector.load %arg2[%c0_1, %c0_2] : memref<1x16xf32, #tpu.memory_space<vmem>>, vector<1x16xf32>
    %2 = vector.broadcast %1 : vector<1x16xf32> to vector<64x16xf32>
    %3 = arith.mulf %0, %2 : vector<64x16xf32>
    %c0_3 = arith.constant 0 : index
    %c0_4 = arith.constant 0 : index
    %4 = vector.load %arg3[%c0_3, %c0_4] : memref<1x16xf32, #tpu.memory_space<vmem>>, vector<1x16xf32>
    %5 = vector.broadcast %4 : vector<1x16xf32> to vector<64x16xf32>
    %6 = arith.addf %3, %5 : vector<64x16xf32>
    %cst = arith.constant 0.000000e+00 : f32
    %7 = vector.broadcast %cst : f32 to vector<64x16xf32>
    %8 = arith.maximumf %6, %7 : vector<64x16xf32>
    %9 = arith.truncf %8 : vector<64x16xf32> to vector<64x16xbf16>
    %c0_5 = arith.constant 0 : index
    %c0_6 = arith.constant 0 : index
    %10 = vector.load %arg4[%c0_5, %c0_6] : memref<64x16xbf16, #tpu.memory_space<vmem>>, vector<64x16xbf16>
    tpu.vector_store %arg4[%c0_5, %c0_6], %9 {strides = array<i32>} : memref<64x16xbf16, #tpu.memory_space<vmem>>, vector<64x16xbf16>,
    return
  }
  func.func @transform_0(%arg0: i32) -> (i32, i32) {
    %c0_i32 = arith.constant 0 : i32
    %c0_i32_0 = arith.constant 0 : i32
    return %arg0, %c0_i32 : i32, i32
  }
  func.func @transform_1(%arg0: i32) -> (i32, i32) {
    %c0_i32 = arith.constant 0 : i32
    %c0_i32_0 = arith.constant 0 : i32
    %c0_i32_1 = arith.constant 0 : i32
    return %c0_i32, %c0_i32_0 : i32, i32
  }
  func.func @transform_2(%arg0: i32) -> (i32, i32) {
    %c0_i32 = arith.constant 0 : i32
    %c0_i32_0 = arith.constant 0 : i32
    %c0_i32_1 = arith.constant 0 : i32
    return %c0_i32, %c0_i32_0 : i32, i32
  }
  func.func @transform_3(%arg0: i32) -> (i32, i32) {
    %c0_i32 = arith.constant 0 : i32
    %c0_i32_0 = arith.constant 0 : i32
    return %arg0, %c0_i32 : i32, i32
  }
}

module attributes {stable_mosaic.version = 11 : i64} {
  func.func @_conv3x3_stats_kernel(%arg0: i32, %arg1: i32, %arg2: memref<1x8x18x4xbf16, #tpu.memory_space<vmem>>, %arg3: memref<1x2x18x4xbf16, #tpu.memory_space<vmem>>, %arg4: memref<1x8x18x4xbf16, #tpu.memory_space<vmem>>, %arg5: memref<1x2x18x4xbf16, #tpu.memory_space<vmem>>, %arg6: memref<72x4xbf16, #tpu.memory_space<vmem>>, %arg7: memref<1x4xf32, #tpu.memory_space<vmem>>, %arg8: memref<128x4xf32, #tpu.memory_space<vmem>>, %arg9: memref<1x1x2x4xf32, #tpu.memory_space<vmem>>) attributes {dimension_semantics = [#tpu.dimension_semantics<parallel>, #tpu.dimension_semantics<parallel>], iteration_bounds = array<i64: 2, 2>, scalar_prefetch = 0 : i64, scratch_operands = 0 : i64, tpu.core_type = #tpu.core_type<tc>, window_params = [{transform_indices = @transform_0, window_bounds = array<i64: 1, 8, 18, 4>}, {transform_indices = @transform_1, window_bounds = array<i64: 1, 2, 18, 4>}, {transform_indices = @transform_2, window_bounds = array<i64: 1, 8, 18, 4>}, {transform_indices = @transform_3, window_bounds = array<i64: 1, 2, 18, 4>}, {pipeline_mode = #tpu.pipeline_mode<synchronous>, transform_indices = @transform_4, window_bounds = array<i64: 72, 4>}, {pipeline_mode = #tpu.pipeline_mode<synchronous>, transform_indices = @transform_5, window_bounds = array<i64: 1, 4>}, {transform_indices = @transform_6, window_bounds = array<i64: 128, 4>}, {transform_indices = @transform_7, window_bounds = array<i64: 1, 1, 2, 4>}]} {
    %c0 = arith.constant 0 : index
    %c0_0 = arith.constant 0 : index
    %c0_1 = arith.constant 0 : index
    %c0_2 = arith.constant 0 : index
    %0 = vector.load %arg2[%c0, %c0_0, %c0_1, %c0_2] : memref<1x8x18x4xbf16, #tpu.memory_space<vmem>>, vector<1x8x18x4xbf16>
    %1 = vector.shape_cast %0 : vector<1x8x18x4xbf16> to vector<8x18x4xbf16>
    %c0_3 = arith.constant 0 : index
    %c0_4 = arith.constant 0 : index
    %c0_5 = arith.constant 0 : index
    %c0_6 = arith.constant 0 : index
    %2 = vector.load %arg3[%c0_3, %c0_4, %c0_5, %c0_6] : memref<1x2x18x4xbf16, #tpu.memory_space<vmem>>, vector<1x2x18x4xbf16>
    %3 = vector.shape_cast %2 : vector<1x2x18x4xbf16> to vector<2x18x4xbf16>
    %4 = tpu.concatenate %1, %3 in 0 : vector<8x18x4xbf16>, vector<2x18x4xbf16> -> vector<10x18x4xbf16>
    %c0_7 = arith.constant 0 : index
    %c0_8 = arith.constant 0 : index
    %c0_9 = arith.constant 0 : index
    %c0_10 = arith.constant 0 : index
    %5 = vector.load %arg4[%c0_7, %c0_8, %c0_9, %c0_10] : memref<1x8x18x4xbf16, #tpu.memory_space<vmem>>, vector<1x8x18x4xbf16>
    %6 = vector.shape_cast %5 : vector<1x8x18x4xbf16> to vector<8x18x4xbf16>
    %c0_11 = arith.constant 0 : index
    %c0_12 = arith.constant 0 : index
    %c0_13 = arith.constant 0 : index
    %c0_14 = arith.constant 0 : index
    %7 = vector.load %arg5[%c0_11, %c0_12, %c0_13, %c0_14] : memref<1x2x18x4xbf16, #tpu.memory_space<vmem>>, vector<1x2x18x4xbf16>
    %8 = vector.shape_cast %7 : vector<1x2x18x4xbf16> to vector<2x18x4xbf16>
    %9 = tpu.concatenate %6, %8 in 0 : vector<8x18x4xbf16>, vector<2x18x4xbf16> -> vector<10x18x4xbf16>
    %10 = tpu.concatenate %4, %9 in 2 : vector<10x18x4xbf16>, vector<10x18x4xbf16> -> vector<10x18x8xbf16>
    %11 = vector.extract_strided_slice %10 {offsets = [0, 0, 0], sizes = [10, 16, 8], strides = [1, 1, 1]} : vector<10x18x8xbf16> to vector<10x16x8xbf16>
    %12 = vector.extract_strided_slice %10 {offsets = [0, 1, 0], sizes = [10, 16, 8], strides = [1, 1, 1]} : vector<10x18x8xbf16> to vector<10x16x8xbf16>
    %13 = vector.extract_strided_slice %10 {offsets = [0, 2, 0], sizes = [10, 16, 8], strides = [1, 1, 1]} : vector<10x18x8xbf16> to vector<10x16x8xbf16>
    %14 = tpu.concatenate %11, %12, %13 in 2 : vector<10x16x8xbf16>, vector<10x16x8xbf16>, vector<10x16x8xbf16> -> vector<10x16x24xbf16>
    %15 = vector.extract_strided_slice %14 {offsets = [0, 0, 0], sizes = [8, 16, 24], strides = [1, 1, 1]} : vector<10x16x24xbf16> to vector<8x16x24xbf16>
    %16 = vector.extract_strided_slice %14 {offsets = [1, 0, 0], sizes = [8, 16, 24], strides = [1, 1, 1]} : vector<10x16x24xbf16> to vector<8x16x24xbf16>
    %17 = vector.extract_strided_slice %14 {offsets = [2, 0, 0], sizes = [8, 16, 24], strides = [1, 1, 1]} : vector<10x16x24xbf16> to vector<8x16x24xbf16>
    %18 = tpu.concatenate %15, %16, %17 in 2 : vector<8x16x24xbf16>, vector<8x16x24xbf16>, vector<8x16x24xbf16> -> vector<8x16x72xbf16>
    %19 = vector.shape_cast %18 : vector<8x16x72xbf16> to vector<128x72xbf16>
    %c0_15 = arith.constant 0 : index
    %c0_16 = arith.constant 0 : index
    %20 = vector.load %arg6[%c0_15, %c0_16] : memref<72x4xbf16, #tpu.memory_space<vmem>>, vector<72x4xbf16>
    %cst = arith.constant dense<0.000000e+00> : vector<128x4xf32>
    %21 = tpu.matmul %19, %20, %cst {dimension_numbers = #tpu.dot_dimension_numbers<[1], [0], [0], [1], [0, 0, 1, 1], [], []>} : vector<128x72xbf16>, vector<72x4xbf16>, vector<128x4xf32> -> vector<128x4xf32>
    %c0_17 = arith.constant 0 : index
    %c0_18 = arith.constant 0 : index
    %22 = vector.load %arg7[%c0_17, %c0_18] : memref<1x4xf32, #tpu.memory_space<vmem>>, vector<1x4xf32>
    %23 = vector.broadcast %22 : vector<1x4xf32> to vector<128x4xf32>
    %24 = arith.addf %21, %23 : vector<128x4xf32>
    %c0_19 = arith.constant 0 : index
    %c0_20 = arith.constant 0 : index
    %25 = vector.load %arg8[%c0_19, %c0_20] : memref<128x4xf32, #tpu.memory_space<vmem>>, vector<128x4xf32>
    tpu.vector_store %arg8[%c0_19, %c0_20], %24 {strides = array<i32>} : memref<128x4xf32, #tpu.memory_space<vmem>>, vector<128x4xf32>,
    %cst_21 = arith.constant dense<0.000000e+00> : vector<4xf32>
    %26 = vector.multi_reduction <add>, %24, %cst_21 [0] : vector<128x4xf32> to vector<4xf32>
    %27 = vector.shape_cast %26 : vector<4xf32> to vector<1x4xf32>
    %28 = arith.mulf %24, %24 : vector<128x4xf32>
    %cst_22 = arith.constant dense<0.000000e+00> : vector<4xf32>
    %29 = vector.multi_reduction <add>, %28, %cst_22 [0] : vector<128x4xf32> to vector<4xf32>
    %30 = vector.shape_cast %29 : vector<4xf32> to vector<1x4xf32>
    %31 = tpu.concatenate %27, %30 in 0 : vector<1x4xf32>, vector<1x4xf32> -> vector<2x4xf32>
    %c0_23 = arith.constant 0 : index
    %c0_24 = arith.constant 0 : index
    %c0_25 = arith.constant 0 : index
    %c0_26 = arith.constant 0 : index
    %32 = vector.load %arg9[%c0_23, %c0_24, %c0_25, %c0_26] : memref<1x1x2x4xf32, #tpu.memory_space<vmem>>, vector<1x1x2x4xf32>
    %33 = vector.shape_cast %32 : vector<1x1x2x4xf32> to vector<2x4xf32>
    %34 = vector.shape_cast %31 : vector<2x4xf32> to vector<1x1x2x4xf32>
    tpu.vector_store %arg9[%c0_23, %c0_24, %c0_25, %c0_26], %34 {strides = array<i32>} : memref<1x1x2x4xf32, #tpu.memory_space<vmem>>, vector<1x1x2x4xf32>,
    return
  }
  func.func @transform_0(%arg0: i32, %arg1: i32) -> (i32, i32, i32, i32) {
    %c0_i32 = arith.constant 0 : i32
    %c0_i32_0 = arith.constant 0 : i32
    %c0_i32_1 = arith.constant 0 : i32
    return %arg0, %arg1, %c0_i32, %c0_i32_0 : i32, i32, i32, i32
  }
  func.func @transform_1(%arg0: i32, %arg1: i32) -> (i32, i32, i32, i32) {
    %c1_i32 = arith.constant 1 : i32
    %0 = arith.addi %arg1, %c1_i32 : i32
    %c4_i32 = arith.constant 4 : i32
    %1 = arith.muli %0, %c4_i32 : i32
    %c0_i32 = arith.constant 0 : i32
    %c0_i32_0 = arith.constant 0 : i32
    %c0_i32_1 = arith.constant 0 : i32
    return %arg0, %1, %c0_i32, %c0_i32_0 : i32, i32, i32, i32
  }
  func.func @transform_2(%arg0: i32, %arg1: i32) -> (i32, i32, i32, i32) {
    %c0_i32 = arith.constant 0 : i32
    %c0_i32_0 = arith.constant 0 : i32
    %c0_i32_1 = arith.constant 0 : i32
    return %arg0, %arg1, %c0_i32, %c0_i32_0 : i32, i32, i32, i32
  }
  func.func @transform_3(%arg0: i32, %arg1: i32) -> (i32, i32, i32, i32) {
    %c1_i32 = arith.constant 1 : i32
    %0 = arith.addi %arg1, %c1_i32 : i32
    %c4_i32 = arith.constant 4 : i32
    %1 = arith.muli %0, %c4_i32 : i32
    %c0_i32 = arith.constant 0 : i32
    %c0_i32_0 = arith.constant 0 : i32
    %c0_i32_1 = arith.constant 0 : i32
    return %arg0, %1, %c0_i32, %c0_i32_0 : i32, i32, i32, i32
  }
  func.func @transform_4(%arg0: i32, %arg1: i32) -> (i32, i32) {
    %c0_i32 = arith.constant 0 : i32
    %c0_i32_0 = arith.constant 0 : i32
    %c0_i32_1 = arith.constant 0 : i32
    return %c0_i32, %c0_i32_0 : i32, i32
  }
  func.func @transform_5(%arg0: i32, %arg1: i32) -> (i32, i32) {
    %c0_i32 = arith.constant 0 : i32
    %c0_i32_0 = arith.constant 0 : i32
    %c0_i32_1 = arith.constant 0 : i32
    return %c0_i32, %c0_i32_0 : i32, i32
  }
  func.func @transform_6(%arg0: i32, %arg1: i32) -> (i32, i32) {
    %c2_i32 = arith.constant 2 : i32
    %0 = arith.muli %arg0, %c2_i32 : i32
    %1 = arith.addi %0, %arg1 : i32
    %c0_i32 = arith.constant 0 : i32
    %c0_i32_0 = arith.constant 0 : i32
    return %1, %c0_i32 : i32, i32
  }
  func.func @transform_7(%arg0: i32, %arg1: i32) -> (i32, i32, i32, i32) {
    %c0_i32 = arith.constant 0 : i32
    %c0_i32_0 = arith.constant 0 : i32
    %c0_i32_1 = arith.constant 0 : i32
    return %arg0, %arg1, %c0_i32, %c0_i32_0 : i32, i32, i32, i32
  }
}

module attributes {stable_mosaic.version = 11 : i64} {
  func.func @_scale_shift_relu_kernel(%arg0: i32, %arg1: memref<64x4xf32, #tpu.memory_space<vmem>>, %arg2: memref<1x4xf32, #tpu.memory_space<vmem>>, %arg3: memref<1x4xf32, #tpu.memory_space<vmem>>, %arg4: memref<64x4xf32, #tpu.memory_space<vmem>>) attributes {dimension_semantics = [#tpu.dimension_semantics<parallel>], iteration_bounds = array<i64: 8>, scalar_prefetch = 0 : i64, scratch_operands = 0 : i64, tpu.core_type = #tpu.core_type<tc>, window_params = [{transform_indices = @transform_0, window_bounds = array<i64: 64, 4>}, {pipeline_mode = #tpu.pipeline_mode<synchronous>, transform_indices = @transform_1, window_bounds = array<i64: 1, 4>}, {pipeline_mode = #tpu.pipeline_mode<synchronous>, transform_indices = @transform_2, window_bounds = array<i64: 1, 4>}, {transform_indices = @transform_3, window_bounds = array<i64: 64, 4>}]} {
    %c0 = arith.constant 0 : index
    %c0_0 = arith.constant 0 : index
    %0 = vector.load %arg1[%c0, %c0_0] : memref<64x4xf32, #tpu.memory_space<vmem>>, vector<64x4xf32>
    %c0_1 = arith.constant 0 : index
    %c0_2 = arith.constant 0 : index
    %1 = vector.load %arg2[%c0_1, %c0_2] : memref<1x4xf32, #tpu.memory_space<vmem>>, vector<1x4xf32>
    %2 = vector.broadcast %1 : vector<1x4xf32> to vector<64x4xf32>
    %3 = arith.mulf %0, %2 : vector<64x4xf32>
    %c0_3 = arith.constant 0 : index
    %c0_4 = arith.constant 0 : index
    %4 = vector.load %arg3[%c0_3, %c0_4] : memref<1x4xf32, #tpu.memory_space<vmem>>, vector<1x4xf32>
    %5 = vector.broadcast %4 : vector<1x4xf32> to vector<64x4xf32>
    %6 = arith.addf %3, %5 : vector<64x4xf32>
    %cst = arith.constant 0.000000e+00 : f32
    %7 = vector.broadcast %cst : f32 to vector<64x4xf32>
    %8 = arith.maximumf %6, %7 : vector<64x4xf32>
    %c0_5 = arith.constant 0 : index
    %c0_6 = arith.constant 0 : index
    %9 = vector.load %arg4[%c0_5, %c0_6] : memref<64x4xf32, #tpu.memory_space<vmem>>, vector<64x4xf32>
    tpu.vector_store %arg4[%c0_5, %c0_6], %8 {strides = array<i32>} : memref<64x4xf32, #tpu.memory_space<vmem>>, vector<64x4xf32>,
    return
  }
  func.func @transform_0(%arg0: i32) -> (i32, i32) {
    %c0_i32 = arith.constant 0 : i32
    %c0_i32_0 = arith.constant 0 : i32
    return %arg0, %c0_i32 : i32, i32
  }
  func.func @transform_1(%arg0: i32) -> (i32, i32) {
    %c0_i32 = arith.constant 0 : i32
    %c0_i32_0 = arith.constant 0 : i32
    %c0_i32_1 = arith.constant 0 : i32
    return %c0_i32, %c0_i32_0 : i32, i32
  }
  func.func @transform_2(%arg0: i32) -> (i32, i32) {
    %c0_i32 = arith.constant 0 : i32
    %c0_i32_0 = arith.constant 0 : i32
    %c0_i32_1 = arith.constant 0 : i32
    return %c0_i32, %c0_i32_0 : i32, i32
  }
  func.func @transform_3(%arg0: i32) -> (i32, i32) {
    %c0_i32 = arith.constant 0 : i32
    %c0_i32_0 = arith.constant 0 : i32
    return %arg0, %c0_i32 : i32, i32
  }
}

</mosaic_0001>

<llo_original>
// kernel: tile.19
$region0: #{tile.19}
  %s0 = inlined_call_operand.vmem [shape: f32[4,4], index: 0, kind: input, shape index: {}]
  %s1 = inlined_call_operand.vmem [shape: f32[1,16], index: 1, kind: output, shape index: {}]
  $region1: #{tile.19} parent=0
    #allocation0 [shape = 'u8[4096]{0}', space=vmem, size = 0x1000, scoped, tag = 'scoped mem for output reshape']
    #allocation1 [shape = 'u8[4096]{0}', space=vmem, size = 0x1000, scoped, tag = 'scoped mem for input reshape']
    %s3 = ssub.s32 16, 1
    %v4 = vld [vmem:[%s0] sm:%s3]
    %5 = vst [vmem:[#allocation1] sm:%s3] %v4
    %v6 = vld [vmem:[#allocation1] sm:$0x1]
    %vm7 = vcmask 31744
    %8 = vst.msk [vmem:[#allocation0] sm:$0x1] %vm7, %v6
    %s9 = scalar_lea.vmem [#allocation1], 3
    %v10 = vld [vmem:[%s9] sm:$0x1]
    %11 = vrot.lane.b32.xlu0 %v10, 12
    %v12 = vpop.permute.xlu0 %11
    %vm13 = vcmask 130144
    %14 = vst.msk [vmem:[#allocation0] sm:$0x1] %vm13, %v12
    %s15 = scalar_lea.vmem [#allocation1], 2
    %v16 = vld [vmem:[%s15] sm:$0x1]
    %17 = vrot.lane.b32.xlu0 %v16, 8
    %v18 = vpop.permute.xlu0 %17
    %vm19 = vcmask 97344
    %20 = vst.msk [vmem:[#allocation0] sm:$0x1] %vm19, %v18
    %s21 = scalar_lea.vmem [#allocation1], 1
    %v22 = vld [vmem:[%s21] sm:$0x1]
    %23 = vrot.lane.b32.xlu0 %v22, 4
    %v24 = vpop.permute.xlu0 %23
    %vm25 = vcmask 64544
    %26 = vst.msk [vmem:[#allocation0] sm:$0x1] %vm25, %v24
    %s28 = ssub.s32 2, 1
    %v29 = vld [vmem:[#allocation0] sm:%s28]
    %s31 = ssub.s32 2, 1
    %32 = vst [vmem:[%s1] sm:%s31] %v29

// kernel: tile.18
$region0: #{tile.18}
  #allocation2 [shape = 's32[1]{0}', space=sflag, size = 0x4, scoped, tag = 'scoped memory for tile.18']
  %s0 = inlined_call_operand.hbm [shape: f32[4], index: 0, kind: input, shape index: {}]
  %s1 = inlined_call_operand.vmem [shape: f32[4,4], index: 1, kind: output, shape index: {}]
  $region1: #{tile.18} parent=0
    #allocation0 [shape = 'u8[512]{0}', space=vmem, size = 0x400, scoped, tag = 'operand span for operand 0']
    #allocation1 [shape = 's32[1]{0}', space=sflag, size = 0x4, scoped, tag = 'scoped memory for tile.18']
    %2 = vsyncpa [#allocation1], 0
    // Predicated region
    $region2: #{tile.18} parent=1 // pred_check
      _
    $region3: #{tile.18} parent=1 // pred_check_branch
      %4 = sbr.rel (0) target = $region5
    $region4: #{tile.18} parent=1 // pred_region
      %6 = vsyncadd [#allocation1], 0
      %s8 = sshll.u32 %s0, 4
      %s9 = int_to_ptr.hbm [resolvable:$true] %s8
      %s10 = sshll.u32 [#allocation0], 4
      %s11 = int_to_ptr.vmem [resolvable:$true] %s10
      %13 = dma.hbm_to_vmem [thread:$0]  %s9, 16, %s11, [#allocation1]
    $region5: #{tile.18} parent=1 // pred_fallthru
      _
    // Predicated region
    $region6: #{tile.18} parent=1 // pred_check
      _
    $region7: #{tile.18} parent=1 // pred_check_branch
      %15 = sbr.rel (0) target = $region9
    $region8: #{tile.18} parent=1 // pred_region
      %17 = dma.done [#allocation1], 16
    $region9: #{tile.18} parent=1 // pred_fallthru
      _
    %v18 = vld [vmem:[#allocation0] ss:$0 sm:$0xff]
    %19 = vst [vmem:[%s1] sm:$0xf] %v18
    %20 = vsyncpa [#allocation1], 1

// kernel: squeeze.4
$region0: #{squeeze.4}
  %s0 = inlined_call_operand.vmem [shape: f32[16], index: 0, kind: input, shape index: {}]
  %s1 = inlined_call_operand.vmem [shape: f32[4,4], index: 1, kind: output, shape index: {}]
  $region1: #{squeeze.4} parent=0
    #allocation0 [shape = 'u8[4096]{0}', space=vmem, size = 0x1000, scoped, tag = 'scoped mem for output reshape']
    #allocation1 [shape = 'u8[4096]{0}', space=vmem, size = 0x1000, scoped, tag = 'scoped mem for input reshape']
    %s3 = ssub.s32 2, 1
    %v4 = vld [vmem:[%s0] sm:%s3]
    %5 = vst [vmem:[#allocation1] sm:%s3] %v4
    %v6 = vld [vmem:[#allocation1] sm:$0x1]
    %vm7 = vcmask 31744
    %8 = vst.msk [vmem:[#allocation0] sm:$0x1] %vm7, %v6
    %v9 = vld [vmem:[#allocation1] sm:$0x1]
    %10 = vrot.lane.b32.xlu0 %v9, 124
    %v11 = vpop.permute.xlu0 %10
    %vm12 = vcmask 31744
    %s13 = scalar_lea.vmem [#allocation0], 1
    %14 = vst.msk [vmem:[%s13] sm:$0x1] %vm12, %v11
    %v15 = vld [vmem:[#allocation1] sm:$0x1]
    %16 = vrot.lane.b32.xlu0 %v15, 120
    %v17 = vpop.permute.xlu0 %16
    %vm18 = vcmask 31744
    %s19 = scalar_lea.vmem [#allocation0], 2
    %20 = vst.msk [vmem:[%s19] sm:$0x1] %vm18, %v17
    %v21 = vld [vmem:[#allocation1] sm:$0x1]
    %22 = vrot.lane.b32.xlu0 %v21, 116
    %v23 = vpop.permute.xlu0 %22
    %vm24 = vcmask 31744
    %s25 = scalar_lea.vmem [#allocation0], 3
    %26 = vst.msk [vmem:[%s25] sm:$0x1] %vm24, %v23
    %s28 = ssub.s32 16, 1
    %v29 = vld [vmem:[#allocation0] sm:%s28]
    %s31 = ssub.s32 16, 1
    %32 = vst [vmem:[%s1] sm:%s31] %v29

// kernel: tile.28
$region0: #{tile.28}
  #allocation0 [shape = 's32[1]{0}', space=sflag, size = 0x4, scoped, tag = 'scoped memory for tile.28']
  %s0 = inlined_call_operand.vmem [shape: f32[4], index: 0, kind: input, shape index: {}]
  %s1 = inlined_call_operand.vmem [shape: f32[4,4], index: 1, kind: output, shape index: {}]
  // Predicated region
  $region2: #{tile.28} parent=0 // pred_check
    _
  $region3: #{tile.28} parent=0 // pred_check_branch
    %3 = sbr.rel (0) target = $region5
  $region4: #{tile.28} parent=0 // pred_region
    _
  $region5: #{tile.28} parent=0 // pred_fallthru
    _
  %v4 = vld [vmem:[%s0] ss:$0 sm:$0xff]
  %5 = vst [vmem:[%s1] sm:$0xf] %v4

// kernel: decoder_forward.5
$region0: #{decoder_forward.5}
  #allocation0 [shape = 'u32[]', space=smem, size = 0x4, offset = 0x4, fixed_abs, tag = 'smem constant byte address 0x4 - core index']
  #allocation1 [shape = 'u32[72,128]{1,0:T(1,128)}', space=vmem, size = 0x9000, scoped, tag = 'internal scratch']
  %s0 = inlined_call_operand.vmem [shape: f32[128,16], index: 0, kind: input, shape index: {}]
  %s1 = inlined_call_operand.vmem [shape: f32[1,16], index: 1, kind: input, shape index: {}]
  %s2 = inlined_call_operand.vmem [shape: f32[1,16], index: 2, kind: input, shape index: {}]
  %s3 = inlined_call_operand.vmem [shape: bf16[128,16], index: 3, kind: output, shape index: {}]
  %s4 = sld [smem:[#allocation0]]
  $region45: #{decoder_forward.5} parent=0
    _
  %s6 = ssub.s32 1, %s4
  %s7 = scalar_select 0, %s6, %s4
  loop: start=0, step=1, limit=4
  $region2: #{decoder_forward.5} parent=0 // loop_pre_header
    _
  $region3: #{decoder_forward.5} parent=0 // loop_header
    %s9 = sphi 0, %s13
    %p10 = scmp.ge.s32.totalorder %s9, 4
    %s19 = sphi 0, %s21
    %s22 = sphi 0, %s19
    %s23 = sphi 0, %s22
    %s39 = sphi 0, %s23
    %s43 = sphi 0, %s43
    %s45 = sphi 0, %s43
    %s46 = sphi 0, %s45
    %s60 = sphi 0, %s46
    %s64 = sphi 0, %s64
    %s66 = sphi 0, %s64
    %s67 = sphi 0, %s66
    %s81 = sphi 0, %s67
    %s87 = sphi 0, %s89
    %s90 = sphi 0, %s87
    %s91 = sphi 0, %s90
    %s107 = sphi 0, %s91
  $region4: #{decoder_forward.5} parent=0 // loop_header_branch
    %12 = sbr.rel (%p10) target = $region8
  $region5: #{decoder_forward.5} parent=0 // loop_body
    %s14 = ssub.s32 %s9, 1
    %s15 = ssub.s32 %s9, 2
    %s16 = sadd.s32 %s9, 1
    %s17 = ssub.s32 %s9, %s16
    %p18 = scmp.eq.s32.totalorder %s17, 0
    %s20 = sadd.s32 %s19, 1
    %s21 = scalar_select %p18, %s19, %s20
    %p24 = pneg %p18
    %p25 = scmp.eq.s32.totalorder %s9, 1
    %p26 = por %p24, %p25
    %p27 = scmp.ne.s32.totalorder %s19, %s22
    %p28 = scmp.eq.s32.totalorder %s9, 0
    %p29 = por %p27, %p28
    %p30 = scmp.ne.s32.totalorder %s19, %s22
    %p31 = scmp.eq.s32.totalorder %s14, 1
    %p32 = por %p30, %p31
    %p33 = scmp.ne.s32.totalorder %s22, %s23
    %p34 = scmp.eq.s32.totalorder %s14, 0
    %p35 = por %p33, %p34
    %p36 = scmp.ne.s32.totalorder %s22, %s23
    %p37 = scmp.eq.s32.totalorder %s15, 1
    %p38 = por %p36, %p37
    %p40 = scmp.ne.s32.totalorder %s23, %s39
    %p41 = scmp.eq.s32.totalorder %s15, 0
    %p42 = por %p40, %p41
    %s44 = sadd.s32 %s43, 1
    %p47 = scmp.eq.s32.totalorder %s9, 1
    %p48 = scmp.ne.s32.totalorder %s43, %s45
    %p49 = scmp.eq.s32.totalorder %s9, 0
    %p50 = por %p48, %p49
    %p51 = scmp.ne.s32.totalorder %s43, %s45
    %p52 = scmp.eq.s32.totalorder %s14, 1
    %p53 = por %p51, %p52
    %p54 = scmp.ne.s32.totalorder %s45, %s46
    %p55 = scmp.eq.s32.totalorder %s14, 0
    %p56 = por %p54, %p55
    %p57 = scmp.ne.s32.totalorder %s45, %s46
    %p58 = scmp.eq.s32.totalorder %s15, 1
    %p59 = por %p57, %p58
    %p61 = scmp.ne.s32.totalorder %s46, %s60
    %p62 = scmp.eq.s32.totalorder %s15, 0
    %p63 = por %p61, %p62
    %s65 = sadd.s32 %s64, 1
    %p68 = scmp.eq.s32.totalorder %s9, 1
    %p69 = scmp.ne.s32.totalorder %s64, %s66
    %p70 = scmp.eq.s32.totalorder %s9, 0
    %p71 = por %p69, %p70
    %p72 = scmp.ne.s32.totalorder %s64, %s66
    %p73 = scmp.eq.s32.totalorder %s14, 1
    %p74 = por %p72, %p73
    %p75 = scmp.ne.s32.totalorder %s66, %s67
    %p76 = scmp.eq.s32.totalorder %s14, 0
    %p77 = por %p75, %p76
    %p78 = scmp.ne.s32.totalorder %s66, %s67
    %p79 = scmp.eq.s32.totalorder %s15, 1
    %p80 = por %p78, %p79
    %p82 = scmp.ne.s32.totalorder %s67, %s81
    %p83 = scmp.eq.s32.totalorder %s15, 0
    %p84 = por %p82, %p83
    %s85 = ssub.s32 %s9, %s16
    %p86 = scmp.eq.s32.totalorder %s85, 0
    %s88 = sadd.s32 %s87, 1
    %s89 = scalar_select %p86, %s87, %s88
    %p92 = pneg %p86
    %p93 = scmp.eq.s32.totalorder %s9, 1
    %p94 = por %p92, %p93
    %p95 = scmp.ne.s32.totalorder %s87, %s90
    %p96 = scmp.eq.s32.totalorder %s9, 0
    %p97 = por %p95, %p96
    %p98 = scmp.ne.s32.totalorder %s87, %s90
    %p99 = scmp.eq.s32.totalorder %s14, 1
    %p100 = por %p98, %p99
    %p101 = scmp.ne.s32.totalorder %s90, %s91
    %p102 = scmp.eq.s32.totalorder %s14, 0
    %p103 = por %p101, %p102
    %p104 = scmp.ne.s32.totalorder %s90, %s91
    %p105 = scmp.eq.s32.totalorder %s15, 1
    %p106 = por %p104, %p105
    %p108 = scmp.ne.s32.totalorder %s91, %s107
    %p109 = scmp.eq.s32.totalorder %s15, 0
    %p110 = por %p108, %p109
    %p111 = scmp.le.s32.totalorder 1, %s9
    %p112 = scmp.lt.s32.totalorder %s9, 3
    %p113 = pnand %p111, %p112
    %p114 = pneg %p113
    // Predicated region
    $region9: #{decoder_forward.5} parent=5 // pred_check
      _
    $region10: #{decoder_forward.5} parent=5 // pred_check_branch
      %116 = sbr.rel (%p113) target = $region12
    $region11: #{decoder_forward.5} parent=5 // pred_region
      %s117 = ssub.s32 %s9, 1
      // Predicated region
      $region13: #{decoder_forward.5} parent=11 // pred_check
        %p118 = pneg %p56
      $region14: #{decoder_forward.5} parent=11 // pred_check_branch
        %120 = sbr.rel (%p118) target = $region16
      $region15: #{decoder_forward.5} parent=11 // pred_region
        _
      $region16: #{decoder_forward.5} parent=11 // pred_fallthru
        _
      // Predicated region
      $region17: #{decoder_forward.5} parent=11 // pred_check
        %p121 = pneg %p77
      $region18: #{decoder_forward.5} parent=11 // pred_check_branch
        %123 = sbr.rel (%p121) target = $region20
      $region19: #{decoder_forward.5} parent=11 // pred_region
        _
      $region20: #{decoder_forward.5} parent=11 // pred_fallthru
        _
    $region12: #{decoder_forward.5} parent=5 // pred_fallthru
      _
    %p124 = scmp.lt.s32.totalorder %s9, 2
    // Predicated region
    $region21: #{decoder_forward.5} parent=5 // pred_check
      %p125 = pneg %p124
    $region22: #{decoder_forward.5} parent=5 // pred_check_branch
      %127 = sbr.rel (%p125) target = $region24
    $region23: #{decoder_forward.5} parent=5 // pred_region
      // Predicated region
      $region25: #{decoder_forward.5} parent=23 // pred_check
        %p128 = pneg %p29
      $region26: #{decoder_forward.5} parent=23 // pred_check_branch
        %130 = sbr.rel (%p128) target = $region28
      $region27: #{decoder_forward.5} parent=23 // pred_region
        %s131 = smul.u32 8, %s9
        %p132 = scmp.lt.s32.totalorder %s131, 15
        %s133 = scalar_select %p132, %s131, 15
        %s134 = smul.addr %s133, 8
        %s135 = scalar_lea.vmem %s0, %s134
        %s136 = smul.u32 8, %s9
      $region28: #{decoder_forward.5} parent=23 // pred_fallthru
        _
    $region24: #{decoder_forward.5} parent=5 // pred_fallthru
      _
    %p137 = scmp.le.s32.totalorder 1, %s9
    %p138 = scmp.lt.s32.totalorder %s9, 3
    %p139 = pnand %p137, %p138
    %p140 = pneg %p139
    // Predicated region
    $region29: #{decoder_forward.5} parent=5 // pred_check
      _
    $region30: #{decoder_forward.5} parent=5 // pred_check_branch
      %142 = sbr.rel (%p139) target = $region32
    $region31: #{decoder_forward.5} parent=5 // pred_region
      %s143 = ssub.s32 %s9, 1
      %s144 = smul.u32 8, %s14
      %p145 = scmp.lt.s32.totalorder %s144, 15
      %s146 = scalar_select %p145, %s144, 15
      %s147 = smul.addr %s146, 8
      %s148 = scalar_lea.vmem %s0, %s147
      %p149 = pneg %p35
      %p150 = pneg %p32
      %p151 = pneg %p56
      %p152 = pneg %p53
      %p153 = pneg %p77
      %p154 = pneg %p74
      %p155 = pneg %p103
      %p156 = pneg %p100
      %s157 = smul.u32 8, %s14
      %p158 = scmp.lt.s32.totalorder %s157, 15
      %s159 = scalar_select %p158, %s157, 15
      %s160 = smul.addr %s159, 4
      %s161 = scalar_lea.vmem %s3, %s160
      %s162 = smul.u32 8, %s14
      %p163 = scmp.lt.s32.totalorder %s162, 15
      %s164 = scalar_select %p163, %s162, 15
      %s165 = smul.addr %s164, 8
      %s166 = scalar_lea.vmem %s0, %s165
      %s167 = smul.u32 8, %s14
      %s168 = smul.u32 8, %s14
      %p169 = scmp.lt.s32.totalorder %s168, 15
      %s170 = scalar_select %p169, %s168, 15
      %s171 = smul.addr %s170, 4
      %s172 = scalar_lea.vmem %s3, %s171
      %s173 = smul.u32 8, %s14
      %v174 = vld [vmem:[%s166] sm:$0xff]
      %v175 = vld [vmem:[%s166 + $0x8] sm:$0xff]
      %v176 = vld [vmem:[%s166 + $0x10] sm:$0xff]
      %v177 = vld [vmem:[%s166 + $0x18] sm:$0xff]
      %v178 = vld [vmem:[%s166 + $0x20] sm:$0xff]
      %v179 = vld [vmem:[%s166 + $0x28] sm:$0xff]
      %v180 = vld [vmem:[%s166 + $0x30] sm:$0xff]
      %v181 = vld [vmem:[%s166 + $0x38] sm:$0xff]
      %v182 = vld [vmem:[%s1] sm:$0x1]
      %v184 = vperm.slane %v182, 0
      %v186 = vmul.f32 %v174, %v184
      %v187 = vmul.f32 %v175, %v184
      %v188 = vmul.f32 %v176, %v184
      %v189 = vmul.f32 %v177, %v184
      %v190 = vmul.f32 %v178, %v184
      %v191 = vmul.f32 %v179, %v184
      %v192 = vmul.f32 %v180, %v184
      %v193 = vmul.f32 %v181, %v184
      %v194 = vld [vmem:[%s2] sm:$0x1]
      %v196 = vperm.slane %v194, 0
      %v198 = vadd.f32 %v186, %v196
      %v199 = vadd.f32 %v187, %v196
      %v200 = vadd.f32 %v188, %v196
      %v201 = vadd.f32 %v189, %v196
      %v202 = vadd.f32 %v190, %v196
      %v203 = vadd.f32 %v191, %v196
      %v204 = vadd.f32 %v192, %v196
      %v205 = vadd.f32 %v193, %v196
      %v206 = vmax.f32 %v198, 0.0
      %v207 = vmax.f32 %v199, 0.0
      %v208 = vmax.f32 %v200, 0.0
      %v209 = vmax.f32 %v201, 0.0
      %v210 = vmax.f32 %v202, 0.0
      %v211 = vmax.f32 %v203, 0.0
      %v212 = vmax.f32 %v204, 0.0
      %v213 = vmax.f32 %v205, 0.0
      %v214 = vpack.c.bf16 %v206, %v206
      %v215 = vpack.c.bf16 %v207, %v207
      %v216 = vpack.c.bf16 %v208, %v208
      %v217 = vpack.c.bf16 %v209, %v209
      %v218 = vpack.c.bf16 %v210, %v210
      %v219 = vpack.c.bf16 %v211, %v211
      %v220 = vpack.c.bf16 %v212, %v212
      %v221 = vpack.c.bf16 %v213, %v213
      %vm222 = vcmask 125952
      %223 = vst.msk [vmem:[%s172] sm:$0xf] %vm222, %v214
      %224 = vst.msk [vmem:[%s172 + $0x4] sm:$0xf] %vm222, %v215
      %225 = vst.msk [vmem:[%s172 + $0x8] sm:$0xf] %vm222, %v216
      %226 = vst.msk [vmem:[%s172 + $0xc] sm:$0xf] %vm222, %v217
      %227 = vst.msk [vmem:[%s172 + $0x10] sm:$0xf] %vm222, %v218
      %228 = vst.msk [vmem:[%s172 + $0x14] sm:$0xf] %vm222, %v219
      %229 = vst.msk [vmem:[%s172 + $0x18] sm:$0xf] %vm222, %v220
      %230 = vst.msk [vmem:[%s172 + $0x1c] sm:$0xf] %vm222, %v221
      %s231 = smul.u32 8, %s14
      %p232 = scmp.lt.s32.totalorder %s231, 15
      %s233 = scalar_select %p232, %s231, 15
      %s234 = smul.addr %s233, 4
      %s235 = scalar_lea.vmem %s3, %s234
      // Predicated region
      $region33: #{decoder_forward.5} parent=31 // pred_check
        %p236 = pneg %p100
      $region34: #{decoder_forward.5} parent=31 // pred_check_branch
        %238 = sbr.rel (%p236) target = $region36
      $region35: #{decoder_forward.5} parent=31 // pred_region
        %s239 = smul.u32 8, %s14
      $region36: #{decoder_forward.5} parent=31 // pred_fallthru
        _
    $region32: #{decoder_forward.5} parent=5 // pred_fallthru
      _
    %p240 = scmp.le.s32.totalorder 2, %s9
    // Predicated region
    $region37: #{decoder_forward.5} parent=5 // pred_check
      %p241 = pneg %p240
    $region38: #{decoder_forward.5} parent=5 // pred_check_branch
      %243 = sbr.rel (%p241) target = $region40
    $region39: #{decoder_forward.5} parent=5 // pred_region
      %s244 = ssub.s32 %s9, 2
      // Predicated region
      $region41: #{decoder_forward.5} parent=39 // pred_check
        %p245 = pneg %p106
      $region42: #{decoder_forward.5} parent=39 // pred_check_branch
        %247 = sbr.rel (%p245) target = $region44
      $region43: #{decoder_forward.5} parent=39 // pred_region
        %s248 = smul.u32 8, %s15
        %p249 = scmp.lt.s32.totalorder %s248, 15
        %s250 = scalar_select %p249, %s248, 15
        %s251 = smul.addr %s250, 4
        %s252 = scalar_lea.vmem %s3, %s251
      $region44: #{decoder_forward.5} parent=39 // pred_fallthru
        _
    $region40: #{decoder_forward.5} parent=5 // pred_fallthru
      _
  $region6: #{decoder_forward.5} parent=0 // loop_footer
    %s13 = sadd.s32 1, %s9
  $region7: #{decoder_forward.5} parent=0 // loop_footer_branch
    %8 = sbr.rel target = $region3
  $region8: #{decoder_forward.5} parent=0 // loop_exit
    _

// kernel: decoder_forward.4
$region0: #{decoder_forward.4}
  #allocation0 [shape = 'u32[]', space=smem, size = 0x4, offset = 0x4, fixed_abs, tag = 'smem constant byte address 0x4 - core index']
  #allocation1 [shape = 'u32[72,128]{1,0:T(1,128)}', space=vmem, size = 0x9000, scoped, tag = 'internal scratch']
  %s0 = inlined_call_operand.vmem [shape: f32[128,8], index: 0, kind: input, shape index: {}]
  %s1 = inlined_call_operand.vmem [shape: bf16[8,16], index: 1, kind: input, shape index: {}]
  %s2 = inlined_call_operand.vmem [shape: f32[1,16], index: 2, kind: input, shape index: {}]
  %s3 = inlined_call_operand.vmem [shape: f32[128,16], index: 3, kind: output, shape index: {0}]
  %s4 = inlined_call_operand.vmem [shape: f32[2,2,16], index: 4, kind: output, shape index: {1}]
  %5 = xla_tuple %s3, %s4
  %s6 = sld [smem:[#allocation0]]
  $region53: #{decoder_forward.4} parent=0
    _
  %s8 = ssub.s32 1, %s6
  %s9 = scalar_select 0, %s8, %s6
  loop: start=0, step=1, limit=4
  $region2: #{decoder_forward.4} parent=0 // loop_pre_header
    _
  $region3: #{decoder_forward.4} parent=0 // loop_header
    %s11 = sphi 0, %s15
    %p12 = scmp.ge.s32.totalorder %s11, 4
    %s21 = sphi 0, %s23
    %s24 = sphi 0, %s21
    %s25 = sphi 0, %s24
    %s41 = sphi 0, %s25
    %s45 = sphi 0, %s45
    %s47 = sphi 0, %s45
    %s48 = sphi 0, %s47
    %s62 = sphi 0, %s48
    %s66 = sphi 0, %s66
    %s68 = sphi 0, %s66
    %s69 = sphi 0, %s68
    %s83 = sphi 0, %s69
    %s89 = sphi 0, %s91
    %s92 = sphi 0, %s89
    %s93 = sphi 0, %s92
    %s109 = sphi 0, %s93
    %s115 = sphi 0, %s117
    %s118 = sphi 0, %s115
    %s119 = sphi 0, %s118
    %s135 = sphi 0, %s119
  $region4: #{decoder_forward.4} parent=0 // loop_header_branch
    %14 = sbr.rel (%p12) target = $region8
  $region5: #{decoder_forward.4} parent=0 // loop_body
    %s16 = ssub.s32 %s11, 1
    %s17 = ssub.s32 %s11, 2
    %s18 = sadd.s32 %s11, 1
    %s19 = ssub.s32 %s11, %s18
    %p20 = scmp.eq.s32.totalorder %s19, 0
    %s22 = sadd.s32 %s21, 1
    %s23 = scalar_select %p20, %s21, %s22
    %p26 = pneg %p20
    %p27 = scmp.eq.s32.totalorder %s11, 1
    %p28 = por %p26, %p27
    %p29 = scmp.ne.s32.totalorder %s21, %s24
    %p30 = scmp.eq.s32.totalorder %s11, 0
    %p31 = por %p29, %p30
    %p32 = scmp.ne.s32.totalorder %s21, %s24
    %p33 = scmp.eq.s32.totalorder %s16, 1
    %p34 = por %p32, %p33
    %p35 = scmp.ne.s32.totalorder %s24, %s25
    %p36 = scmp.eq.s32.totalorder %s16, 0
    %p37 = por %p35, %p36
    %p38 = scmp.ne.s32.totalorder %s24, %s25
    %p39 = scmp.eq.s32.totalorder %s17, 1
    %p40 = por %p38, %p39
    %p42 = scmp.ne.s32.totalorder %s25, %s41
    %p43 = scmp.eq.s32.totalorder %s17, 0
    %p44 = por %p42, %p43
    %s46 = sadd.s32 %s45, 1
    %p49 = scmp.eq.s32.totalorder %s11, 1
    %p50 = scmp.ne.s32.totalorder %s45, %s47
    %p51 = scmp.eq.s32.totalorder %s11, 0
    %p52 = por %p50, %p51
    %p53 = scmp.ne.s32.totalorder %s45, %s47
    %p54 = scmp.eq.s32.totalorder %s16, 1
    %p55 = por %p53, %p54
    %p56 = scmp.ne.s32.totalorder %s47, %s48
    %p57 = scmp.eq.s32.totalorder %s16, 0
    %p58 = por %p56, %p57
    %p59 = scmp.ne.s32.totalorder %s47, %s48
    %p60 = scmp.eq.s32.totalorder %s17, 1
    %p61 = por %p59, %p60
    %p63 = scmp.ne.s32.totalorder %s48, %s62
    %p64 = scmp.eq.s32.totalorder %s17, 0
    %p65 = por %p63, %p64
    %s67 = sadd.s32 %s66, 1
    %p70 = scmp.eq.s32.totalorder %s11, 1
    %p71 = scmp.ne.s32.totalorder %s66, %s68
    %p72 = scmp.eq.s32.totalorder %s11, 0
    %p73 = por %p71, %p72
    %p74 = scmp.ne.s32.totalorder %s66, %s68
    %p75 = scmp.eq.s32.totalorder %s16, 1
    %p76 = por %p74, %p75
    %p77 = scmp.ne.s32.totalorder %s68, %s69
    %p78 = scmp.eq.s32.totalorder %s16, 0
    %p79 = por %p77, %p78
    %p80 = scmp.ne.s32.totalorder %s68, %s69
    %p81 = scmp.eq.s32.totalorder %s17, 1
    %p82 = por %p80, %p81
    %p84 = scmp.ne.s32.totalorder %s69, %s83
    %p85 = scmp.eq.s32.totalorder %s17, 0
    %p86 = por %p84, %p85
    %s87 = ssub.s32 %s11, %s18
    %p88 = scmp.eq.s32.totalorder %s87, 0
    %s90 = sadd.s32 %s89, 1
    %s91 = scalar_select %p88, %s89, %s90
    %p94 = pneg %p88
    %p95 = scmp.eq.s32.totalorder %s11, 1
    %p96 = por %p94, %p95
    %p97 = scmp.ne.s32.totalorder %s89, %s92
    %p98 = scmp.eq.s32.totalorder %s11, 0
    %p99 = por %p97, %p98
    %p100 = scmp.ne.s32.totalorder %s89, %s92
    %p101 = scmp.eq.s32.totalorder %s16, 1
    %p102 = por %p100, %p101
    %p103 = scmp.ne.s32.totalorder %s92, %s93
    %p104 = scmp.eq.s32.totalorder %s16, 0
    %p105 = por %p103, %p104
    %p106 = scmp.ne.s32.totalorder %s92, %s93
    %p107 = scmp.eq.s32.totalorder %s17, 1
    %p108 = por %p106, %p107
    %p110 = scmp.ne.s32.totalorder %s93, %s109
    %p111 = scmp.eq.s32.totalorder %s17, 0
    %p112 = por %p110, %p111
    %s113 = ssub.s32 %s11, %s18
    %p114 = scmp.eq.s32.totalorder %s113, 0
    %s116 = sadd.s32 %s115, 1
    %s117 = scalar_select %p114, %s115, %s116
    %p120 = pneg %p114
    %p121 = scmp.eq.s32.totalorder %s11, 1
    %p122 = por %p120, %p121
    %p123 = scmp.ne.s32.totalorder %s115, %s118
    %p124 = scmp.eq.s32.totalorder %s11, 0
    %p125 = por %p123, %p124
    %p126 = scmp.ne.s32.totalorder %s115, %s118
    %p127 = scmp.eq.s32.totalorder %s16, 1
    %p128 = por %p126, %p127
    %p129 = scmp.ne.s32.totalorder %s118, %s119
    %p130 = scmp.eq.s32.totalorder %s16, 0
    %p131 = por %p129, %p130
    %p132 = scmp.ne.s32.totalorder %s118, %s119
    %p133 = scmp.eq.s32.totalorder %s17, 1
    %p134 = por %p132, %p133
    %p136 = scmp.ne.s32.totalorder %s119, %s135
    %p137 = scmp.eq.s32.totalorder %s17, 0
    %p138 = por %p136, %p137
    %p139 = scmp.le.s32.totalorder 1, %s11
    %p140 = scmp.lt.s32.totalorder %s11, 3
    %p141 = pnand %p139, %p140
    %p142 = pneg %p141
    // Predicated region
    $region9: #{decoder_forward.4} parent=5 // pred_check
      _
    $region10: #{decoder_forward.4} parent=5 // pred_check_branch
      %144 = sbr.rel (%p141) target = $region12
    $region11: #{decoder_forward.4} parent=5 // pred_region
      %s145 = ssub.s32 %s11, 1
      // Predicated region
      $region13: #{decoder_forward.4} parent=11 // pred_check
        %p146 = pneg %p58
      $region14: #{decoder_forward.4} parent=11 // pred_check_branch
        %148 = sbr.rel (%p146) target = $region16
      $region15: #{decoder_forward.4} parent=11 // pred_region
        _
      $region16: #{decoder_forward.4} parent=11 // pred_fallthru
        _
      // Predicated region
      $region17: #{decoder_forward.4} parent=11 // pred_check
        %p149 = pneg %p79
      $region18: #{decoder_forward.4} parent=11 // pred_check_branch
        %151 = sbr.rel (%p149) target = $region20
      $region19: #{decoder_forward.4} parent=11 // pred_region
        _
      $region20: #{decoder_forward.4} parent=11 // pred_fallthru
        _
    $region12: #{decoder_forward.4} parent=5 // pred_fallthru
      _
    %p152 = scmp.lt.s32.totalorder %s11, 2
    // Predicated region
    $region21: #{decoder_forward.4} parent=5 // pred_check
      %p153 = pneg %p152
    $region22: #{decoder_forward.4} parent=5 // pred_check_branch
      %155 = sbr.rel (%p153) target = $region24
    $region23: #{decoder_forward.4} parent=5 // pred_region
      // Predicated region
      $region25: #{decoder_forward.4} parent=23 // pred_check
        %p156 = pneg %p31
      $region26: #{decoder_forward.4} parent=23 // pred_check_branch
        %158 = sbr.rel (%p156) target = $region28
      $region27: #{decoder_forward.4} parent=23 // pred_region
        %s159 = smul.u32 8, %s11
        %p160 = scmp.lt.s32.totalorder %s159, 15
        %s161 = scalar_select %p160, %s159, 15
        %s162 = smul.addr %s161, 8
        %s163 = scalar_lea.vmem %s0, %s162
        %s164 = smul.u32 8, %s11
      $region28: #{decoder_forward.4} parent=23 // pred_fallthru
        _
    $region24: #{decoder_forward.4} parent=5 // pred_fallthru
      _
    %p165 = scmp.le.s32.totalorder 1, %s11
    %p166 = scmp.lt.s32.totalorder %s11, 3
    %p167 = pnand %p165, %p166
    %p168 = pneg %p167
    // Predicated region
    $region29: #{decoder_forward.4} parent=5 // pred_check
      _
    $region30: #{decoder_forward.4} parent=5 // pred_check_branch
      %170 = sbr.rel (%p167) target = $region32
    $region31: #{decoder_forward.4} parent=5 // pred_region
      %s171 = ssub.s32 %s11, 1
      %s172 = smul.u32 8, %s16
      %p173 = scmp.lt.s32.totalorder %s172, 15
      %s174 = scalar_select %p173, %s172, 15
      %s175 = smul.addr %s174, 8
      %s176 = scalar_lea.vmem %s0, %s175
      %p177 = pneg %p37
      %p178 = pneg %p34
      %p179 = pneg %p58
      %p180 = pneg %p55
      %p181 = pneg %p79
      %p182 = pneg %p76
      %p183 = pneg %p105
      %p184 = pneg %p102
      %s185 = smul.u32 8, %s16
      %p186 = scmp.lt.s32.totalorder %s185, 15
      %s187 = scalar_select %p186, %s185, 15
      %s188 = smul.addr %s187, 8
      %s189 = scalar_lea.vmem %s3, %s188
      %p190 = pneg %p131
      %p191 = pneg %p128
      %p192 = scmp.lt.s32.totalorder %s16, 1
      %s193 = scalar_select %p192, %s16, 1
      %s194 = smul.addr %s193, 2
      %s195 = scalar_lea.vmem %s4, %s194
      %s196 = smul.u32 8, %s16
      %p197 = scmp.lt.s32.totalorder %s196, 15
      %s198 = scalar_select %p197, %s196, 15
      %s199 = smul.addr %s198, 8
      %s200 = scalar_lea.vmem %s0, %s199
      %s201 = smul.u32 8, %s16
      %s202 = smul.u32 8, %s16
      %p203 = scmp.lt.s32.totalorder %s202, 15
      %s204 = scalar_select %p203, %s202, 15
      %s205 = smul.addr %s204, 8
      %s206 = scalar_lea.vmem %s3, %s205
      %s207 = smul.u32 8, %s16
      %p208 = scmp.lt.s32.totalorder %s16, 1
      %s209 = scalar_select %p208, %s16, 1
      %s210 = smul.addr %s209, 2
      %s211 = scalar_lea.vmem %s4, %s210
      %v213 = vld [vmem:[%s200] sm:$0xff]
      %v214 = vld [vmem:[%s200 + $0x8] sm:$0xff]
      %v215 = vld [vmem:[%s200 + $0x10] sm:$0xff]
      %v216 = vld [vmem:[%s200 + $0x18] sm:$0xff]
      %v217 = vld [vmem:[%s200 + $0x20] sm:$0xff]
      %v218 = vld [vmem:[%s200 + $0x28] sm:$0xff]
      %v219 = vld [vmem:[%s200 + $0x30] sm:$0xff]
      %v220 = vld [vmem:[%s200 + $0x38] sm:$0xff]
      %v221 = vpack.c.bf16 %v214, %v213
      %v222 = vpack.c.bf16 %v216, %v215
      %v223 = vpack.c.bf16 %v218, %v217
      %v224 = vpack.c.bf16 %v220, %v219
      %v225 = vld [vmem:[%s1] sm:$0xf]
      %v226 = vld [vmem:[%s2] sm:$0x1]
      %v228 = vperm.slane %v226, 0
      %vm230 = vcmask 64512
      %v232 = vsel %vm230, %v221, 0
      %v235 = vsel %vm230, %v222, 0
      %v238 = vsel %vm230, %v223, 0
      %v241 = vsel %vm230, %v224, 0
      %vm243 = vcmask 1043456
      %v245 = vsel %vm243, %v225, 0
      %247 = vmatpush.bf16.msra.mxu0 0
      %248 = vmatpush.bf16.msra.mxu0 0
      %249 = vmatpush.bf16.msra.mxu0 0
      %250 = vmatpush.bf16.msra.mxu0 0
      %251 = vmatpush.bf16.msra.mxu0 0
      %252 = vmatpush.bf16.msra.mxu0 0
      %253 = vmatpush.bf16.msra.mxu0 0
      %254 = vmatpush.bf16.msra.mxu0 %v245
      %255 = vmatmul.bf16.gmra.mxu0 %v232
      %v256 = vpop.f32.mrf.mxu0
      %v257 = vadd.f32 %v228, %v256
      %v258 = vpop.f32.mrf.mxu0
      %v259 = vadd.f32 %v228, %v258
      %260 = vmatmul.bf16.gmra.mxu0 %v235
      %v261 = vpop.f32.mrf.mxu0
      %v262 = vadd.f32 %v228, %v261
      %v263 = vpop.f32.mrf.mxu0
      %v264 = vadd.f32 %v228, %v263
      %265 = vmatmul.bf16.gmra.mxu0 %v238
      %v266 = vpop.f32.mrf.mxu0
      %v267 = vadd.f32 %v228, %v266
      %v268 = vpop.f32.mrf.mxu0
      %v269 = vadd.f32 %v228, %v268
      %270 = vmatmul.bf16.gmra.mxu0 %v241
      %v271 = vpop.f32.mrf.mxu0
      %v272 = vadd.f32 %v228, %v271
      %v273 = vpop.f32.mrf.mxu0
      %v274 = vadd.f32 %v228, %v273
      %275 = vdwg.mxu0
      %vm276 = vcmask 130048
      %277 = vst.msk [vmem:[%s206] sm:$0xff] %vm276, %v257
      %278 = vst.msk [vmem:[%s206 + $0x8] sm:$0xff] %vm276, %v259
      %279 = vst.msk [vmem:[%s206 + $0x10] sm:$0xff] %vm276, %v262
      %280 = vst.msk [vmem:[%s206 + $0x18] sm:$0xff] %vm276, %v264
      %281 = vst.msk [vmem:[%s206 + $0x20] sm:$0xff] %vm276, %v267
      %282 = vst.msk [vmem:[%s206 + $0x28] sm:$0xff] %vm276, %v269
      %283 = vst.msk [vmem:[%s206 + $0x30] sm:$0xff] %vm276, %v272
      %284 = vst.msk [vmem:[%s206 + $0x38] sm:$0xff] %vm276, %v274
      %v285 = vsel %vm276, %v257, 0.0
      %v286 = vsel %vm276, %v259, 0.0
      %v287 = vadd.f32 %v285, %v286
      %v288 = vsel %vm276, %v262, 0.0
      %v289 = vadd.f32 %v287, %v288
      %v290 = vsel %vm276, %v264, 0.0
      %v291 = vadd.f32 %v289, %v290
      %v292 = vsel %vm276, %v267, 0.0
      %v293 = vadd.f32 %v291, %v292
      %v294 = vsel %vm276, %v269, 0.0
      %v295 = vadd.f32 %v293, %v294
      %v296 = vsel %vm276, %v272, 0.0
      %v297 = vadd.f32 %v295, %v296
      %v298 = vsel %vm276, %v274, 0.0
      %v299 = vadd.f32 %v297, %v298
      %v300 = vrot.slane %v299, 4
      %v301 = vadd.f32 %v299, %v300
      %v302 = vrot.slane %v301, 2
      %v303 = vadd.f32 %v301, %v302
      %v304 = vrot.slane %v303, 1
      %v305 = vadd.f32 %v303, %v304
      %v306 = vmul.f32 %v257, %v257
      %v307 = vmul.f32 %v259, %v259
      %v308 = vmul.f32 %v262, %v262
      %v309 = vmul.f32 %v264, %v264
      %v310 = vmul.f32 %v267, %v267
      %v311 = vmul.f32 %v269, %v269
      %v312 = vmul.f32 %v272, %v272
      %v313 = vmul.f32 %v274, %v274
      %v314 = vsel %vm276, %v306, 0.0
      %v315 = vsel %vm276, %v307, 0.0
      %v316 = vadd.f32 %v314, %v315
      %v317 = vsel %vm276, %v308, 0.0
      %v318 = vadd.f32 %v316, %v317
      %v319 = vsel %vm276, %v309, 0.0
      %v320 = vadd.f32 %v318, %v319
      %v321 = vsel %vm276, %v310, 0.0
      %v322 = vadd.f32 %v320, %v321
      %v323 = vsel %vm276, %v311, 0.0
      %v324 = vadd.f32 %v322, %v323
      %v325 = vsel %vm276, %v312, 0.0
      %v326 = vadd.f32 %v324, %v325
      %v327 = vsel %vm276, %v313, 0.0
      %v328 = vadd.f32 %v326, %v327
      %v329 = vrot.slane %v328, 4
      %v330 = vadd.f32 %v328, %v329
      %v331 = vrot.slane %v330, 2
      %v332 = vadd.f32 %v330, %v331
      %v333 = vrot.slane %v332, 1
      %v334 = vadd.f32 %v332, %v333
      %vm335 = vcmask 1040384
      %v336 = vsel %vm335, %v305, %v334
      %vm337 = vcmask 123904
      %338 = vst.msk [vmem:[%s211] sm:$0x3] %vm337, %v336
      %s339 = smul.u32 8, %s16
      %p340 = scmp.lt.s32.totalorder %s339, 15
      %s341 = scalar_select %p340, %s339, 15
      %s342 = smul.addr %s341, 8
      %s343 = scalar_lea.vmem %s3, %s342
      %p344 = scmp.lt.s32.totalorder %s16, 1
      %s345 = scalar_select %p344, %s16, 1
      %s346 = smul.addr %s345, 2
      %s347 = scalar_lea.vmem %s4, %s346
      // Predicated region
      $region33: #{decoder_forward.4} parent=31 // pred_check
        %p348 = pneg %p102
      $region34: #{decoder_forward.4} parent=31 // pred_check_branch
        %350 = sbr.rel (%p348) target = $region36
      $region35: #{decoder_forward.4} parent=31 // pred_region
        %s351 = smul.u32 8, %s16
      $region36: #{decoder_forward.4} parent=31 // pred_fallthru
        _
      // Predicated region
      $region37: #{decoder_forward.4} parent=31 // pred_check
        %p352 = pneg %p128
      $region38: #{decoder_forward.4} parent=31 // pred_check_branch
        %354 = sbr.rel (%p352) target = $region40
      $region39: #{decoder_forward.4} parent=31 // pred_region
        _
      $region40: #{decoder_forward.4} parent=31 // pred_fallthru
        _
    $region32: #{decoder_forward.4} parent=5 // pred_fallthru
      _
    %p355 = scmp.le.s32.totalorder 2, %s11
    // Predicated region
    $region41: #{decoder_forward.4} parent=5 // pred_check
      %p356 = pneg %p355
    $region42: #{decoder_forward.4} parent=5 // pred_check_branch
      %358 = sbr.rel (%p356) target = $region44
    $region43: #{decoder_forward.4} parent=5 // pred_region
      %s359 = ssub.s32 %s11, 2
      // Predicated region
      $region45: #{decoder_forward.4} parent=43 // pred_check
        %p360 = pneg %p108
      $region46: #{decoder_forward.4} parent=43 // pred_check_branch
        %362 = sbr.rel (%p360) target = $region48
      $region47: #{decoder_forward.4} parent=43 // pred_region
        %s363 = smul.u32 8, %s17
        %p364 = scmp.lt.s32.totalorder %s363, 15
        %s365 = scalar_select %p364, %s363, 15
        %s366 = smul.addr %s365, 8
        %s367 = scalar_lea.vmem %s3, %s366
      $region48: #{decoder_forward.4} parent=43 // pred_fallthru
        _
      // Predicated region
      $region49: #{decoder_forward.4} parent=43 // pred_check
        %p368 = pneg %p134
      $region50: #{decoder_forward.4} parent=43 // pred_check_branch
        %370 = sbr.rel (%p368) target = $region52
      $region51: #{decoder_forward.4} parent=43 // pred_region
        %p371 = scmp.lt.s32.totalorder %s17, 1
        %s372 = scalar_select %p371, %s17, 1
        %s373 = smul.addr %s372, 2
        %s374 = scalar_lea.vmem %s4, %s373
      $region52: #{decoder_forward.4} parent=43 // pred_fallthru
        _
    $region44: #{decoder_forward.4} parent=5 // pred_fallthru
      _
  $region6: #{decoder_forward.4} parent=0 // loop_footer
    %s15 = sadd.s32 1, %s11
  $region7: #{decoder_forward.4} parent=0 // loop_footer_branch
    %10 = sbr.rel target = $region3
  $region8: #{decoder_forward.4} parent=0 // loop_exit
    _

// kernel: decoder_forward.7
$region0: #{decoder_forward.7}
  #allocation0 [shape = 'u32[]', space=smem, size = 0x4, offset = 0x4, fixed_abs, tag = 'smem constant byte address 0x4 - core index']
  #allocation1 [shape = 'u32[72,128]{1,0:T(1,128)}', space=vmem, size = 0x9000, scoped, tag = 'internal scratch']
  %s0 = inlined_call_operand.vmem [shape: f32[512,4], index: 0, kind: input, shape index: {}]
  %s1 = inlined_call_operand.vmem [shape: f32[1,4], index: 1, kind: input, shape index: {}]
  %s2 = inlined_call_operand.vmem [shape: f32[1,4], index: 2, kind: input, shape index: {}]
  %s3 = inlined_call_operand.vmem [shape: f32[512,4], index: 3, kind: output, shape index: {}]
  %s4 = sld [smem:[#allocation0]]
  $region45: #{decoder_forward.7} parent=0
    _
  %s6 = ssub.s32 1, %s4
  %s7 = scalar_select 0, %s6, %s4
  loop: start=0, step=1, limit=10
  $region2: #{decoder_forward.7} parent=0 // loop_pre_header
    _
  $region3: #{decoder_forward.7} parent=0 // loop_header
    %s9 = sphi 0, %s13
    %p10 = scmp.ge.s32.totalorder %s9, 10
    %s19 = sphi 0, %s21
    %s22 = sphi 0, %s19
    %s23 = sphi 0, %s22
    %s39 = sphi 0, %s23
    %s43 = sphi 0, %s43
    %s45 = sphi 0, %s43
    %s46 = sphi 0, %s45
    %s60 = sphi 0, %s46
    %s64 = sphi 0, %s64
    %s66 = sphi 0, %s64
    %s67 = sphi 0, %s66
    %s81 = sphi 0, %s67
    %s87 = sphi 0, %s89
    %s90 = sphi 0, %s87
    %s91 = sphi 0, %s90
    %s107 = sphi 0, %s91
  $region4: #{decoder_forward.7} parent=0 // loop_header_branch
    %12 = sbr.rel (%p10) target = $region8
  $region5: #{decoder_forward.7} parent=0 // loop_body
    %s14 = ssub.s32 %s9, 1
    %s15 = ssub.s32 %s9, 2
    %s16 = sadd.s32 %s9, 1
    %s17 = ssub.s32 %s9, %s16
    %p18 = scmp.eq.s32.totalorder %s17, 0
    %s20 = sadd.s32 %s19, 1
    %s21 = scalar_select %p18, %s19, %s20
    %p24 = pneg %p18
    %p25 = scmp.eq.s32.totalorder %s9, 7
    %p26 = por %p24, %p25
    %p27 = scmp.ne.s32.totalorder %s19, %s22
    %p28 = scmp.eq.s32.totalorder %s9, 0
    %p29 = por %p27, %p28
    %p30 = scmp.ne.s32.totalorder %s19, %s22
    %p31 = scmp.eq.s32.totalorder %s14, 7
    %p32 = por %p30, %p31
    %p33 = scmp.ne.s32.totalorder %s22, %s23
    %p34 = scmp.eq.s32.totalorder %s14, 0
    %p35 = por %p33, %p34
    %p36 = scmp.ne.s32.totalorder %s22, %s23
    %p37 = scmp.eq.s32.totalorder %s15, 7
    %p38 = por %p36, %p37
    %p40 = scmp.ne.s32.totalorder %s23, %s39
    %p41 = scmp.eq.s32.totalorder %s15, 0
    %p42 = por %p40, %p41
    %s44 = sadd.s32 %s43, 1
    %p47 = scmp.eq.s32.totalorder %s9, 7
    %p48 = scmp.ne.s32.totalorder %s43, %s45
    %p49 = scmp.eq.s32.totalorder %s9, 0
    %p50 = por %p48, %p49
    %p51 = scmp.ne.s32.totalorder %s43, %s45
    %p52 = scmp.eq.s32.totalorder %s14, 7
    %p53 = por %p51, %p52
    %p54 = scmp.ne.s32.totalorder %s45, %s46
    %p55 = scmp.eq.s32.totalorder %s14, 0
    %p56 = por %p54, %p55
    %p57 = scmp.ne.s32.totalorder %s45, %s46
    %p58 = scmp.eq.s32.totalorder %s15, 7
    %p59 = por %p57, %p58
    %p61 = scmp.ne.s32.totalorder %s46, %s60
    %p62 = scmp.eq.s32.totalorder %s15, 0
    %p63 = por %p61, %p62
    %s65 = sadd.s32 %s64, 1
    %p68 = scmp.eq.s32.totalorder %s9, 7
    %p69 = scmp.ne.s32.totalorder %s64, %s66
    %p70 = scmp.eq.s32.totalorder %s9, 0
    %p71 = por %p69, %p70
    %p72 = scmp.ne.s32.totalorder %s64, %s66
    %p73 = scmp.eq.s32.totalorder %s14, 7
    %p74 = por %p72, %p73
    %p75 = scmp.ne.s32.totalorder %s66, %s67
    %p76 = scmp.eq.s32.totalorder %s14, 0
    %p77 = por %p75, %p76
    %p78 = scmp.ne.s32.totalorder %s66, %s67
    %p79 = scmp.eq.s32.totalorder %s15, 7
    %p80 = por %p78, %p79
    %p82 = scmp.ne.s32.totalorder %s67, %s81
    %p83 = scmp.eq.s32.totalorder %s15, 0
    %p84 = por %p82, %p83
    %s85 = ssub.s32 %s9, %s16
    %p86 = scmp.eq.s32.totalorder %s85, 0
    %s88 = sadd.s32 %s87, 1
    %s89 = scalar_select %p86, %s87, %s88
    %p92 = pneg %p86
    %p93 = scmp.eq.s32.totalorder %s9, 7
    %p94 = por %p92, %p93
    %p95 = scmp.ne.s32.totalorder %s87, %s90
    %p96 = scmp.eq.s32.totalorder %s9, 0
    %p97 = por %p95, %p96
    %p98 = scmp.ne.s32.totalorder %s87, %s90
    %p99 = scmp.eq.s32.totalorder %s14, 7
    %p100 = por %p98, %p99
    %p101 = scmp.ne.s32.totalorder %s90, %s91
    %p102 = scmp.eq.s32.totalorder %s14, 0
    %p103 = por %p101, %p102
    %p104 = scmp.ne.s32.totalorder %s90, %s91
    %p105 = scmp.eq.s32.totalorder %s15, 7
    %p106 = por %p104, %p105
    %p108 = scmp.ne.s32.totalorder %s91, %s107
    %p109 = scmp.eq.s32.totalorder %s15, 0
    %p110 = por %p108, %p109
    %p111 = scmp.le.s32.totalorder 1, %s9
    %p112 = scmp.lt.s32.totalorder %s9, 9
    %p113 = pnand %p111, %p112
    %p114 = pneg %p113
    // Predicated region
    $region9: #{decoder_forward.7} parent=5 // pred_check
      _
    $region10: #{decoder_forward.7} parent=5 // pred_check_branch
      %116 = sbr.rel (%p113) target = $region12
    $region11: #{decoder_forward.7} parent=5 // pred_region
      %s117 = ssub.s32 %s9, 1
      // Predicated region
      $region13: #{decoder_forward.7} parent=11 // pred_check
        %p118 = pneg %p56
      $region14: #{decoder_forward.7} parent=11 // pred_check_branch
        %120 = sbr.rel (%p118) target = $region16
      $region15: #{decoder_forward.7} parent=11 // pred_region
        _
      $region16: #{decoder_forward.7} parent=11 // pred_fallthru
        _
      // Predicated region
      $region17: #{decoder_forward.7} parent=11 // pred_check
        %p121 = pneg %p77
      $region18: #{decoder_forward.7} parent=11 // pred_check_branch
        %123 = sbr.rel (%p121) target = $region20
      $region19: #{decoder_forward.7} parent=11 // pred_region
        _
      $region20: #{decoder_forward.7} parent=11 // pred_fallthru
        _
    $region12: #{decoder_forward.7} parent=5 // pred_fallthru
      _
    %p124 = scmp.lt.s32.totalorder %s9, 8
    // Predicated region
    $region21: #{decoder_forward.7} parent=5 // pred_check
      %p125 = pneg %p124
    $region22: #{decoder_forward.7} parent=5 // pred_check_branch
      %127 = sbr.rel (%p125) target = $region24
    $region23: #{decoder_forward.7} parent=5 // pred_region
      // Predicated region
      $region25: #{decoder_forward.7} parent=23 // pred_check
        %p128 = pneg %p29
      $region26: #{decoder_forward.7} parent=23 // pred_check_branch
        %130 = sbr.rel (%p128) target = $region28
      $region27: #{decoder_forward.7} parent=23 // pred_region
        %s131 = smul.u32 8, %s9
        %p132 = scmp.lt.s32.totalorder %s131, 63
        %s133 = scalar_select %p132, %s131, 63
        %s134 = smul.addr %s133, 8
        %s135 = scalar_lea.vmem %s0, %s134
        %s136 = smul.u32 8, %s9
      $region28: #{decoder_forward.7} parent=23 // pred_fallthru
        _
    $region24: #{decoder_forward.7} parent=5 // pred_fallthru
      _
    %p137 = scmp.le.s32.totalorder 1, %s9
    %p138 = scmp.lt.s32.totalorder %s9, 9
    %p139 = pnand %p137, %p138
    %p140 = pneg %p139
    // Predicated region
    $region29: #{decoder_forward.7} parent=5 // pred_check
      _
    $region30: #{decoder_forward.7} parent=5 // pred_check_branch
      %142 = sbr.rel (%p139) target = $region32
    $region31: #{decoder_forward.7} parent=5 // pred_region
      %s143 = ssub.s32 %s9, 1
      %s144 = smul.u32 8, %s14
      %p145 = scmp.lt.s32.totalorder %s144, 63
      %s146 = scalar_select %p145, %s144, 63
      %s147 = smul.addr %s146, 8
      %s148 = scalar_lea.vmem %s0, %s147
      %p149 = pneg %p35
      %p150 = pneg %p32
      %p151 = pneg %p56
      %p152 = pneg %p53
      %p153 = pneg %p77
      %p154 = pneg %p74
      %p155 = pneg %p103
      %p156 = pneg %p100
      %s157 = smul.u32 8, %s14
      %p158 = scmp.lt.s32.totalorder %s157, 63
      %s159 = scalar_select %p158, %s157, 63
      %s160 = smul.addr %s159, 8
      %s161 = scalar_lea.vmem %s3, %s160
      %s162 = smul.u32 8, %s14
      %p163 = scmp.lt.s32.totalorder %s162, 63
      %s164 = scalar_select %p163, %s162, 63
      %s165 = smul.addr %s164, 8
      %s166 = scalar_lea.vmem %s0, %s165
      %s167 = smul.u32 8, %s14
      %s168 = smul.u32 8, %s14
      %p169 = scmp.lt.s32.totalorder %s168, 63
      %s170 = scalar_select %p169, %s168, 63
      %s171 = smul.addr %s170, 8
      %s172 = scalar_lea.vmem %s3, %s171
      %s173 = smul.u32 8, %s14
      %v174 = vld [vmem:[%s166] sm:$0xff]
      %v175 = vld [vmem:[%s166 + $0x8] sm:$0xff]
      %v176 = vld [vmem:[%s166 + $0x10] sm:$0xff]
      %v177 = vld [vmem:[%s166 + $0x18] sm:$0xff]
      %v178 = vld [vmem:[%s166 + $0x20] sm:$0xff]
      %v179 = vld [vmem:[%s166 + $0x28] sm:$0xff]
      %v180 = vld [vmem:[%s166 + $0x30] sm:$0xff]
      %v181 = vld [vmem:[%s166 + $0x38] sm:$0xff]
      %v182 = vld [vmem:[%s1] sm:$0x1]
      %v184 = vperm.slane %v182, 0
      %v186 = vmul.f32 %v174, %v184
      %v187 = vmul.f32 %v175, %v184
      %v188 = vmul.f32 %v176, %v184
      %v189 = vmul.f32 %v177, %v184
      %v190 = vmul.f32 %v178, %v184
      %v191 = vmul.f32 %v179, %v184
      %v192 = vmul.f32 %v180, %v184
      %v193 = vmul.f32 %v181, %v184
      %v194 = vld [vmem:[%s2] sm:$0x1]
      %v196 = vperm.slane %v194, 0
      %v198 = vadd.f32 %v186, %v196
      %v199 = vadd.f32 %v187, %v196
      %v200 = vadd.f32 %v188, %v196
      %v201 = vadd.f32 %v189, %v196
      %v202 = vadd.f32 %v190, %v196
      %v203 = vadd.f32 %v191, %v196
      %v204 = vadd.f32 %v192, %v196
      %v205 = vadd.f32 %v193, %v196
      %v206 = vmax.f32 %v198, 0.0
      %v207 = vmax.f32 %v199, 0.0
      %v208 = vmax.f32 %v200, 0.0
      %v209 = vmax.f32 %v201, 0.0
      %v210 = vmax.f32 %v202, 0.0
      %v211 = vmax.f32 %v203, 0.0
      %v212 = vmax.f32 %v204, 0.0
      %v213 = vmax.f32 %v205, 0.0
      %vm214 = vcmask 31744
      %215 = vst.msk [vmem:[%s172] sm:$0xff] %vm214, %v206
      %216 = vst.msk [vmem:[%s172 + $0x8] sm:$0xff] %vm214, %v207
      %217 = vst.msk [vmem:[%s172 + $0x10] sm:$0xff] %vm214, %v208
      %218 = vst.msk [vmem:[%s172 + $0x18] sm:$0xff] %vm214, %v209
      %219 = vst.msk [vmem:[%s172 + $0x20] sm:$0xff] %vm214, %v210
      %220 = vst.msk [vmem:[%s172 + $0x28] sm:$0xff] %vm214, %v211
      %221 = vst.msk [vmem:[%s172 + $0x30] sm:$0xff] %vm214, %v212
      %222 = vst.msk [vmem:[%s172 + $0x38] sm:$0xff] %vm214, %v213
      %s223 = smul.u32 8, %s14
      %p224 = scmp.lt.s32.totalorder %s223, 63
      %s225 = scalar_select %p224, %s223, 63
      %s226 = smul.addr %s225, 8
      %s227 = scalar_lea.vmem %s3, %s226
      // Predicated region
      $region33: #{decoder_forward.7} parent=31 // pred_check
        %p228 = pneg %p100
      $region34: #{decoder_forward.7} parent=31 // pred_check_branch
        %230 = sbr.rel (%p228) target = $region36
      $region35: #{decoder_forward.7} parent=31 // pred_region
        %s231 = smul.u32 8, %s14
      $region36: #{decoder_forward.7} parent=31 // pred_fallthru
        _
    $region32: #{decoder_forward.7} parent=5 // pred_fallthru
      _
    %p232 = scmp.le.s32.totalorder 2, %s9
    // Predicated region
    $region37: #{decoder_forward.7} parent=5 // pred_check
      %p233 = pneg %p232
    $region38: #{decoder_forward.7} parent=5 // pred_check_branch
      %235 = sbr.rel (%p233) target = $region40
    $region39: #{decoder_forward.7} parent=5 // pred_region
      %s236 = ssub.s32 %s9, 2
      // Predicated region
      $region41: #{decoder_forward.7} parent=39 // pred_check
        %p237 = pneg %p106
      $region42: #{decoder_forward.7} parent=39 // pred_check_branch
        %239 = sbr.rel (%p237) target = $region44
      $region43: #{decoder_forward.7} parent=39 // pred_region
        %s240 = smul.u32 8, %s15
        %p241 = scmp.lt.s32.totalorder %s240, 63
        %s242 = scalar_select %p241, %s240, 63
        %s243 = smul.addr %s242, 8
        %s244 = scalar_lea.vmem %s3, %s243
      $region44: #{decoder_forward.7} parent=39 // pred_fallthru
        _
    $region40: #{decoder_forward.7} parent=5 // pred_fallthru
      _
  $region6: #{decoder_forward.7} parent=0 // loop_footer
    %s13 = sadd.s32 1, %s9
  $region7: #{decoder_forward.7} parent=0 // loop_footer_branch
    %8 = sbr.rel target = $region3
  $region8: #{decoder_forward.7} parent=0 // loop_exit
    _

// kernel: decoder_forward.6
$region0: #{decoder_forward.6}
  #allocation0 [shape = 'u32[]', space=smem, size = 0x4, offset = 0x4, fixed_abs, tag = 'smem constant byte address 0x4 - core index']
  #allocation1 [shape = 'u32[72,128]{1,0:T(1,128)}', space=vmem, size = 0x9000, scoped, tag = 'internal scratch']
  %s0 = inlined_call_operand.vmem [shape: bf16[2,18,18,4], index: 0, kind: input, shape index: {}, may-alias: {0,1}]
  %s1 = inlined_call_operand.vmem [shape: bf16[2,18,18,4], index: 1, kind: input, shape index: {}, may-alias: {0,1}]
  %s2 = inlined_call_operand.vmem [shape: bf16[2,18,18,4], index: 2, kind: input, shape index: {}, may-alias: {2,3}]
  %s3 = inlined_call_operand.vmem [shape: bf16[2,18,18,4], index: 3, kind: input, shape index: {}, may-alias: {2,3}]
  %s4 = inlined_call_operand.vmem [shape: bf16[72,4], index: 4, kind: input, shape index: {}]
  %s5 = inlined_call_operand.vmem [shape: f32[1,4], index: 5, kind: input, shape index: {}]
  %s6 = inlined_call_operand.vmem [shape: f32[512,4], index: 6, kind: output, shape index: {0}]
  %s7 = inlined_call_operand.vmem [shape: f32[2,2,2,4], index: 7, kind: output, shape index: {1}]
  %8 = xla_tuple %s6, %s7
  %s9 = sld [smem:[#allocation0]]
  $region65: #{decoder_forward.6} parent=0
    _
  %s11 = ssub.s32 1, %s9
  %s12 = scalar_select 0, %s11, %s9
  loop: start=0, step=1, limit=6
  $region2: #{decoder_forward.6} parent=0 // loop_pre_header
    _
  $region3: #{decoder_forward.6} parent=0 // loop_header
    %s14 = sphi 0, %s18
    %p15 = scmp.ge.s32.totalorder %s14, 6
    %s21 = sphi 0, %s33
    %s22 = sphi 0, %s29
    %s23 = sphi 0, %s21
    %s24 = sphi 0, %s22
    %s25 = sphi 0, %s23
    %s26 = sphi 0, %s24
    %s38 = sphi 0, %s40
    %s41 = sphi 0, %s38
    %s42 = sphi 0, %s41
    %s58 = sphi 0, %s42
    %s70 = sphi 0, %s72
    %s73 = sphi 0, %s70
    %s74 = sphi 0, %s73
    %s90 = sphi 0, %s74
    %s98 = sphi 0, %s100
    %s101 = sphi 0, %s98
    %s102 = sphi 0, %s101
    %s118 = sphi 0, %s102
    %s130 = sphi 0, %s132
    %s133 = sphi 0, %s130
    %s134 = sphi 0, %s133
    %s150 = sphi 0, %s134
    %s154 = sphi 0, %s154
    %s156 = sphi 0, %s154
    %s157 = sphi 0, %s156
    %s171 = sphi 0, %s157
    %s175 = sphi 0, %s175
    %s177 = sphi 0, %s175
    %s178 = sphi 0, %s177
    %s192 = sphi 0, %s178
    %s202 = sphi 0, %s204
    %s205 = sphi 0, %s202
    %s206 = sphi 0, %s205
    %s222 = sphi 0, %s206
    %s230 = sphi 0, %s232
    %s233 = sphi 0, %s230
    %s234 = sphi 0, %s233
    %s250 = sphi 0, %s234
  $region4: #{decoder_forward.6} parent=0 // loop_header_branch
    %17 = sbr.rel (%p15) target = $region8
  $region5: #{decoder_forward.6} parent=0 // loop_body
    %s19 = ssub.s32 %s14, 1
    %s20 = ssub.s32 %s14, 2
    %s27 = sadd.s32 1, %s22
    %p28 = scmp.ge.s32.totalorder %s27, 2
    %s29 = scalar_select %p28, 0, %s27
    %s30 = sadd.s32 1, %s21
    %s31 = scalar_select %p28, %s30, %s21
    %p32 = scmp.ge.s32.totalorder %s31, 2
    %s33 = scalar_select %p32, 0, %s31
    %s34 = ssub.s32 %s21, %s33
    %s35 = ssub.s32 %s22, %s29
    %s36 = sor.u32 %s34, %s35
    %p37 = scmp.eq.s32.totalorder %s36, 0
    %s39 = sadd.s32 %s38, 1
    %s40 = scalar_select %p37, %s38, %s39
    %p43 = pneg %p37
    %p44 = scmp.eq.s32.totalorder %s14, 3
    %p45 = por %p43, %p44
    %p46 = scmp.ne.s32.totalorder %s38, %s41
    %p47 = scmp.eq.s32.totalorder %s14, 0
    %p48 = por %p46, %p47
    %p49 = scmp.ne.s32.totalorder %s38, %s41
    %p50 = scmp.eq.s32.totalorder %s19, 3
    %p51 = por %p49, %p50
    %p52 = scmp.ne.s32.totalorder %s41, %s42
    %p53 = scmp.eq.s32.totalorder %s19, 0
    %p54 = por %p52, %p53
    %p55 = scmp.ne.s32.totalorder %s41, %s42
    %p56 = scmp.eq.s32.totalorder %s20, 3
    %p57 = por %p55, %p56
    %p59 = scmp.ne.s32.totalorder %s42, %s58
    %p60 = scmp.eq.s32.totalorder %s20, 0
    %p61 = por %p59, %p60
    %s62 = sadd.s32 %s22, 1
    %s63 = smul.u32 %s62, 4
    %s64 = sadd.s32 %s29, 1
    %s65 = smul.u32 %s64, 4
    %s66 = ssub.s32 %s21, %s33
    %s67 = ssub.s32 %s63, %s65
    %s68 = sor.u32 %s66, %s67
    %p69 = scmp.eq.s32.totalorder %s68, 0
    %s71 = sadd.s32 %s70, 1
    %s72 = scalar_select %p69, %s70, %s71
    %p75 = pneg %p69
    %p76 = scmp.eq.s32.totalorder %s14, 3
    %p77 = por %p75, %p76
    %p78 = scmp.ne.s32.totalorder %s70, %s73
    %p79 = scmp.eq.s32.totalorder %s14, 0
    %p80 = por %p78, %p79
    %p81 = scmp.ne.s32.totalorder %s70, %s73
    %p82 = scmp.eq.s32.totalorder %s19, 3
    %p83 = por %p81, %p82
    %p84 = scmp.ne.s32.totalorder %s73, %s74
    %p85 = scmp.eq.s32.totalorder %s19, 0
    %p86 = por %p84, %p85
    %p87 = scmp.ne.s32.totalorder %s73, %s74
    %p88 = scmp.eq.s32.totalorder %s20, 3
    %p89 = por %p87, %p88
    %p91 = scmp.ne.s32.totalorder %s74, %s90
    %p92 = scmp.eq.s32.totalorder %s20, 0
    %p93 = por %p91, %p92
    %s94 = ssub.s32 %s21, %s33
    %s95 = ssub.s32 %s22, %s29
    %s96 = sor.u32 %s94, %s95
    %p97 = scmp.eq.s32.totalorder %s96, 0
    %s99 = sadd.s32 %s98, 1
    %s100 = scalar_select %p97, %s98, %s99
    %p103 = pneg %p97
    %p104 = scmp.eq.s32.totalorder %s14, 3
    %p105 = por %p103, %p104
    %p106 = scmp.ne.s32.totalorder %s98, %s101
    %p107 = scmp.eq.s32.totalorder %s14, 0
    %p108 = por %p106, %p107
    %p109 = scmp.ne.s32.totalorder %s98, %s101
    %p110 = scmp.eq.s32.totalorder %s19, 3
    %p111 = por %p109, %p110
    %p112 = scmp.ne.s32.totalorder %s101, %s102
    %p113 = scmp.eq.s32.totalorder %s19, 0
    %p114 = por %p112, %p113
    %p115 = scmp.ne.s32.totalorder %s101, %s102
    %p116 = scmp.eq.s32.totalorder %s20, 3
    %p117 = por %p115, %p116
    %p119 = scmp.ne.s32.totalorder %s102, %s118
    %p120 = scmp.eq.s32.totalorder %s20, 0
    %p121 = por %p119, %p120
    %s122 = sadd.s32 %s22, 1
    %s123 = smul.u32 %s122, 4
    %s124 = sadd.s32 %s29, 1
    %s125 = smul.u32 %s124, 4
    %s126 = ssub.s32 %s21, %s33
    %s127 = ssub.s32 %s123, %s125
    %s128 = sor.u32 %s126, %s127
    %p129 = scmp.eq.s32.totalorder %s128, 0
    %s131 = sadd.s32 %s130, 1
    %s132 = scalar_select %p129, %s130, %s131
    %p135 = pneg %p129
    %p136 = scmp.eq.s32.totalorder %s14, 3
    %p137 = por %p135, %p136
    %p138 = scmp.ne.s32.totalorder %s130, %s133
    %p139 = scmp.eq.s32.totalorder %s14, 0
    %p140 = por %p138, %p139
    %p141 = scmp.ne.s32.totalorder %s130, %s133
    %p142 = scmp.eq.s32.totalorder %s19, 3
    %p143 = por %p141, %p142
    %p144 = scmp.ne.s32.totalorder %s133, %s134
    %p145 = scmp.eq.s32.totalorder %s19, 0
    %p146 = por %p144, %p145
    %p147 = scmp.ne.s32.totalorder %s133, %s134
    %p148 = scmp.eq.s32.totalorder %s20, 3
    %p149 = por %p147, %p148
    %p151 = scmp.ne.s32.totalorder %s134, %s150
    %p152 = scmp.eq.s32.totalorder %s20, 0
    %p153 = por %p151, %p152
    %s155 = sadd.s32 %s154, 1
    %p158 = scmp.eq.s32.totalorder %s14, 3
    %p159 = scmp.ne.s32.totalorder %s154, %s156
    %p160 = scmp.eq.s32.totalorder %s14, 0
    %p161 = por %p159, %p160
    %p162 = scmp.ne.s32.totalorder %s154, %s156
    %p163 = scmp.eq.s32.totalorder %s19, 3
    %p164 = por %p162, %p163
    %p165 = scmp.ne.s32.totalorder %s156, %s157
    %p166 = scmp.eq.s32.totalorder %s19, 0
    %p167 = por %p165, %p166
    %p168 = scmp.ne.s32.totalorder %s156, %s157
    %p169 = scmp.eq.s32.totalorder %s20, 3
    %p170 = por %p168, %p169
    %p172 = scmp.ne.s32.totalorder %s157, %s171
    %p173 = scmp.eq.s32.totalorder %s20, 0
    %p174 = por %p172, %p173
    %s176 = sadd.s32 %s175, 1
    %p179 = scmp.eq.s32.totalorder %s14, 3
    %p180 = scmp.ne.s32.totalorder %s175, %s177
    %p181 = scmp.eq.s32.totalorder %s14, 0
    %p182 = por %p180, %p181
    %p183 = scmp.ne.s32.totalorder %s175, %s177
    %p184 = scmp.eq.s32.totalorder %s19, 3
    %p185 = por %p183, %p184
    %p186 = scmp.ne.s32.totalorder %s177, %s178
    %p187 = scmp.eq.s32.totalorder %s19, 0
    %p188 = por %p186, %p187
    %p189 = scmp.ne.s32.totalorder %s177, %s178
    %p190 = scmp.eq.s32.totalorder %s20, 3
    %p191 = por %p189, %p190
    %p193 = scmp.ne.s32.totalorder %s178, %s192
    %p194 = scmp.eq.s32.totalorder %s20, 0
    %p195 = por %p193, %p194
    %s196 = smul.u32 %s21, 2
    %s197 = sadd.s32 %s196, %s22
    %s198 = smul.u32 %s33, 2
    %s199 = sadd.s32 %s198, %s29
    %s200 = ssub.s32 %s197, %s199
    %p201 = scmp.eq.s32.totalorder %s200, 0
    %s203 = sadd.s32 %s202, 1
    %s204 = scalar_select %p201, %s202, %s203
    %p207 = pneg %p201
    %p208 = scmp.eq.s32.totalorder %s14, 3
    %p209 = por %p207, %p208
    %p210 = scmp.ne.s32.totalorder %s202, %s205
    %p211 = scmp.eq.s32.totalorder %s14, 0
    %p212 = por %p210, %p211
    %p213 = scmp.ne.s32.totalorder %s202, %s205
    %p214 = scmp.eq.s32.totalorder %s19, 3
    %p215 = por %p213, %p214
    %p216 = scmp.ne.s32.totalorder %s205, %s206
    %p217 = scmp.eq.s32.totalorder %s19, 0
    %p218 = por %p216, %p217
    %p219 = scmp.ne.s32.totalorder %s205, %s206
    %p220 = scmp.eq.s32.totalorder %s20, 3
    %p221 = por %p219, %p220
    %p223 = scmp.ne.s32.totalorder %s206, %s222
    %p224 = scmp.eq.s32.totalorder %s20, 0
    %p225 = por %p223, %p224
    %s226 = ssub.s32 %s21, %s33
    %s227 = ssub.s32 %s22, %s29
    %s228 = sor.u32 %s226, %s227
    %p229 = scmp.eq.s32.totalorder %s228, 0
    %s231 = sadd.s32 %s230, 1
    %s232 = scalar_select %p229, %s230, %s231
    %p235 = pneg %p229
    %p236 = scmp.eq.s32.totalorder %s14, 3
    %p237 = por %p235, %p236
    %p238 = scmp.ne.s32.totalorder %s230, %s233
    %p239 = scmp.eq.s32.totalorder %s14, 0
    %p240 = por %p238, %p239
    %p241 = scmp.ne.s32.totalorder %s230, %s233
    %p242 = scmp.eq.s32.totalorder %s19, 3
    %p243 = por %p241, %p242
    %p244 = scmp.ne.s32.totalorder %s233, %s234
    %p245 = scmp.eq.s32.totalorder %s19, 0
    %p246 = por %p244, %p245
    %p247 = scmp.ne.s32.totalorder %s233, %s234
    %p248 = scmp.eq.s32.totalorder %s20, 3
    %p249 = por %p247, %p248
    %p251 = scmp.ne.s32.totalorder %s234, %s250
    %p252 = scmp.eq.s32.totalorder %s20, 0
    %p253 = por %p251, %p252
    %p254 = scmp.le.s32.totalorder 1, %s14
    %p255 = scmp.lt.s32.totalorder %s14, 5
    %p256 = pnand %p254, %p255
    %p257 = pneg %p256
    // Predicated region
    $region9: #{decoder_forward.6} parent=5 // pred_check
      _
    $region10: #{decoder_forward.6} parent=5 // pred_check_branch
      %259 = sbr.rel (%p256) target = $region12
    $region11: #{decoder_forward.6} parent=5 // pred_region
      %s260 = ssub.s32 %s14, 1
      // Predicated region
      $region13: #{decoder_forward.6} parent=11 // pred_check
        %p261 = pneg %p167
      $region14: #{decoder_forward.6} parent=11 // pred_check_branch
        %263 = sbr.rel (%p261) target = $region16
      $region15: #{decoder_forward.6} parent=11 // pred_region
        _
      $region16: #{decoder_forward.6} parent=11 // pred_fallthru
        _
      // Predicated region
      $region17: #{decoder_forward.6} parent=11 // pred_check
        %p264 = pneg %p188
      $region18: #{decoder_forward.6} parent=11 // pred_check_branch
        %266 = sbr.rel (%p264) target = $region20
      $region19: #{decoder_forward.6} parent=11 // pred_region
        _
      $region20: #{decoder_forward.6} parent=11 // pred_fallthru
        _
    $region12: #{decoder_forward.6} parent=5 // pred_fallthru
      _
    %p267 = scmp.lt.s32.totalorder %s14, 4
    // Predicated region
    $region21: #{decoder_forward.6} parent=5 // pred_check
      %p268 = pneg %p267
    $region22: #{decoder_forward.6} parent=5 // pred_check_branch
      %270 = sbr.rel (%p268) target = $region24
    $region23: #{decoder_forward.6} parent=5 // pred_region
      // Predicated region
      $region25: #{decoder_forward.6} parent=23 // pred_check
        %p271 = pneg %p48
      $region26: #{decoder_forward.6} parent=23 // pred_check_branch
        %273 = sbr.rel (%p271) target = $region28
      $region27: #{decoder_forward.6} parent=23 // pred_region
        %s274 = smul.u32 8, %s22
        %s275 = ssub.s32 18, %s274
        %p276 = scmp.lt.s32.totalorder %s275, 8
        %s277 = scalar_select %p276, %s275, 8
        %s278 = smul.u32 4, %s277
        %s279 = smul.u32 %s278, 3
        %p280 = scmp.lt.s32.totalorder %s21, 1
        %s281 = scalar_select %p280, %s21, 1
        %p282 = scmp.lt.s32.totalorder %s274, 17
        %s283 = scalar_select %p282, %s274, 17
        %s284 = smul.addr %s283, 3
        %s285 = smul.addr %s281, 54
        %s286 = sadd.s32 %s284, %s285
        %s287 = smul.addr %s286, 4
        %s288 = scalar_lea.vmem %s0, %s287
        %s289 = smul.u32 8, %s22
        %s290 = ssub.s32 18, %s289
        %p291 = scmp.lt.s32.totalorder %s290, 8
        %s292 = scalar_select %p291, %s290, 8
        %s293 = smul.u32 4, %s292
        %s294 = smul.u32 %s293, 3
      $region28: #{decoder_forward.6} parent=23 // pred_fallthru
        _
      // Predicated region
      $region29: #{decoder_forward.6} parent=23 // pred_check
        %p295 = pneg %p80
      $region30: #{decoder_forward.6} parent=23 // pred_check_branch
        %297 = sbr.rel (%p295) target = $region32
      $region31: #{decoder_forward.6} parent=23 // pred_region
        %s298 = sadd.s32 %s22, 1
        %s299 = smul.u32 %s298, 4
        %s300 = smul.u32 2, %s299
        %p301 = scmp.lt.s32.totalorder %s21, 1
        %s302 = scalar_select %p301, %s21, 1
        %p303 = scmp.lt.s32.totalorder %s300, 17
        %s304 = scalar_select %p303, %s300, 17
        %s305 = smul.addr %s304, 3
        %s306 = smul.addr %s302, 54
        %s307 = sadd.s32 %s305, %s306
        %s308 = smul.addr %s307, 4
        %s309 = scalar_lea.vmem %s1, %s308
        %s310 = sadd.s32 %s22, 1
        %s311 = smul.u32 %s310, 4
        %s312 = smul.u32 2, %s311
      $region32: #{decoder_forward.6} parent=23 // pred_fallthru
        _
      // Predicated region
      $region33: #{decoder_forward.6} parent=23 // pred_check
        %p313 = pneg %p108
      $region34: #{decoder_forward.6} parent=23 // pred_check_branch
        %315 = sbr.rel (%p313) target = $region36
      $region35: #{decoder_forward.6} parent=23 // pred_region
        %s316 = smul.u32 8, %s22
        %s317 = ssub.s32 18, %s316
        %p318 = scmp.lt.s32.totalorder %s317, 8
        %s319 = scalar_select %p318, %s317, 8
        %s320 = smul.u32 4, %s319
        %s321 = smul.u32 %s320, 3
        %p322 = scmp.lt.s32.totalorder %s21, 1
        %s323 = scalar_select %p322, %s21, 1
        %p324 = scmp.lt.s32.totalorder %s316, 17
        %s325 = scalar_select %p324, %s316, 17
        %s326 = smul.addr %s325, 3
        %s327 = smul.addr %s323, 54
        %s328 = sadd.s32 %s326, %s327
        %s329 = smul.addr %s328, 4
        %s330 = scalar_lea.vmem %s2, %s329
        %s331 = smul.u32 8, %s22
        %s332 = ssub.s32 18, %s331
        %p333 = scmp.lt.s32.totalorder %s332, 8
        %s334 = scalar_select %p333, %s332, 8
        %s335 = smul.u32 4, %s334
        %s336 = smul.u32 %s335, 3
      $region36: #{decoder_forward.6} parent=23 // pred_fallthru
        _
      // Predicated region
      $region37: #{decoder_forward.6} parent=23 // pred_check
        %p337 = pneg %p140
      $region38: #{decoder_forward.6} parent=23 // pred_check_branch
        %339 = sbr.rel (%p337) target = $region40
      $region39: #{decoder_forward.6} parent=23 // pred_region
        %s340 = sadd.s32 %s22, 1
        %s341 = smul.u32 %s340, 4
        %s342 = smul.u32 2, %s341
        %p343 = scmp.lt.s32.totalorder %s21, 1
        %s344 = scalar_select %p343, %s21, 1
        %p345 = scmp.lt.s32.totalorder %s342, 17
        %s346 = scalar_select %p345, %s342, 17
        %s347 = smul.addr %s346, 3
        %s348 = smul.addr %s344, 54
        %s349 = sadd.s32 %s347, %s348
        %s350 = smul.addr %s349, 4
        %s351 = scalar_lea.vmem %s3, %s350
        %s352 = sadd.s32 %s22, 1
        %s353 = smul.u32 %s352, 4
        %s354 = smul.u32 2, %s353
      $region40: #{decoder_forward.6} parent=23 // pred_fallthru
        _
    $region24: #{decoder_forward.6} parent=5 // pred_fallthru
      _
    %p355 = scmp.le.s32.totalorder 1, %s14
    %p356 = scmp.lt.s32.totalorder %s14, 5
    %p357 = pnand %p355, %p356
    %p358 = pneg %p357
    // Predicated region
    $region41: #{decoder_forward.6} parent=5 // pred_check
      _
    $region42: #{decoder_forward.6} parent=5 // pred_check_branch
      %360 = sbr.rel (%p357) target = $region44
    $region43: #{decoder_forward.6} parent=5 // pred_region
      %s361 = ssub.s32 %s14, 1
      %s362 = smul.u32 8, %s24
      %s363 = ssub.s32 18, %s362
      %p364 = scmp.lt.s32.totalorder %s363, 8
      %s365 = scalar_select %p364, %s363, 8
      %s366 = smul.u32 4, %s365
      %s367 = smul.u32 %s366, 3
      %p368 = scmp.lt.s32.totalorder %s23, 1
      %s369 = scalar_select %p368, %s23, 1
      %p370 = scmp.lt.s32.totalorder %s362, 17
      %s371 = scalar_select %p370, %s362, 17
      %s372 = smul.addr %s371, 3
      %s373 = smul.addr %s369, 54
      %s374 = sadd.s32 %s372, %s373
      %s375 = smul.addr %s374, 4
      %s376 = scalar_lea.vmem %s0, %s375
      %p377 = pneg %p54
      %p378 = pneg %p51
      %s379 = sadd.s32 %s24, 1
      %s380 = smul.u32 %s379, 4
      %s381 = smul.u32 2, %s380
      %p382 = scmp.lt.s32.totalorder %s23, 1
      %s383 = scalar_select %p382, %s23, 1
      %p384 = scmp.lt.s32.totalorder %s381, 17
      %s385 = scalar_select %p384, %s381, 17
      %s386 = smul.addr %s385, 3
      %s387 = smul.addr %s383, 54
      %s388 = sadd.s32 %s386, %s387
      %s389 = smul.addr %s388, 4
      %s390 = scalar_lea.vmem %s1, %s389
      %p391 = pneg %p86
      %p392 = pneg %p83
      %s393 = smul.u32 8, %s24
      %s394 = ssub.s32 18, %s393
      %p395 = scmp.lt.s32.totalorder %s394, 8
      %s396 = scalar_select %p395, %s394, 8
      %s397 = smul.u32 4, %s396
      %s398 = smul.u32 %s397, 3
      %p399 = scmp.lt.s32.totalorder %s23, 1
      %s400 = scalar_select %p399, %s23, 1
      %p401 = scmp.lt.s32.totalorder %s393, 17
      %s402 = scalar_select %p401, %s393, 17
      %s403 = smul.addr %s402, 3
      %s404 = smul.addr %s400, 54
      %s405 = sadd.s32 %s403, %s404
      %s406 = smul.addr %s405, 4
      %s407 = scalar_lea.vmem %s2, %s406
      %p408 = pneg %p114
      %p409 = pneg %p111
      %s410 = sadd.s32 %s24, 1
      %s411 = smul.u32 %s410, 4
      %s412 = smul.u32 2, %s411
      %p413 = scmp.lt.s32.totalorder %s23, 1
      %s414 = scalar_select %p413, %s23, 1
      %p415 = scmp.lt.s32.totalorder %s412, 17
      %s416 = scalar_select %p415, %s412, 17
      %s417 = smul.addr %s416, 3
      %s418 = smul.addr %s414, 54
      %s419 = sadd.s32 %s417, %s418
      %s420 = smul.addr %s419, 4
      %s421 = scalar_lea.vmem %s3, %s420
      %p422 = pneg %p146
      %p423 = pneg %p143
      %p424 = pneg %p167
      %p425 = pneg %p164
      %p426 = pneg %p188
      %p427 = pneg %p185
      %p428 = pneg %p218
      %p429 = pneg %p215
      %s430 = smul.u32 %s23, 2
      %s431 = sadd.s32 %s430, %s24
      %s432 = smul.u32 16, %s431
      %p433 = scmp.lt.s32.totalorder %s432, 63
      %s434 = scalar_select %p433, %s432, 63
      %s435 = smul.addr %s434, 8
      %s436 = scalar_lea.vmem %s6, %s435
      %p437 = pneg %p246
      %p438 = pneg %p243
      %p439 = scmp.lt.s32.totalorder %s23, 1
      %s440 = scalar_select %p439, %s23, 1
      %p441 = scmp.lt.s32.totalorder %s24, 1
      %s442 = scalar_select %p441, %s24, 1
      %s443 = smul.addr %s440, 2
      %s444 = sadd.s32 %s442, %s443
      %s445 = smul.addr %s444, 2
      %s446 = scalar_lea.vmem %s7, %s445
      %s447 = smul.u32 8, %s24
      %s448 = ssub.s32 18, %s447
      %p449 = scmp.lt.s32.totalorder %s448, 8
      %s450 = scalar_select %p449, %s448, 8
      %s451 = smul.u32 4, %s450
      %s452 = smul.u32 %s451, 3
      %p453 = scmp.lt.s32.totalorder %s23, 1
      %s454 = scalar_select %p453, %s23, 1
      %p455 = scmp.lt.s32.totalorder %s447, 17
      %s456 = scalar_select %p455, %s447, 17
      %s457 = smul.addr %s456, 3
      %s458 = smul.addr %s454, 54
      %s459 = sadd.s32 %s457, %s458
      %s460 = smul.addr %s459, 4
      %s461 = scalar_lea.vmem %s0, %s460
      %s462 = smul.u32 8, %s24
      %s463 = ssub.s32 18, %s462
      %p464 = scmp.lt.s32.totalorder %s463, 8
      %s465 = scalar_select %p464, %s463, 8
      %s466 = smul.u32 4, %s465
      %s467 = smul.u32 %s466, 3
      %s468 = sadd.s32 %s24, 1
      %s469 = smul.u32 %s468, 4
      %s470 = smul.u32 2, %s469
      %p471 = scmp.lt.s32.totalorder %s23, 1
      %s472 = scalar_select %p471, %s23, 1
      %p473 = scmp.lt.s32.totalorder %s470, 17
      %s474 = scalar_select %p473, %s470, 17
      %s475 = smul.addr %s474, 3
      %s476 = smul.addr %s472, 54
      %s477 = sadd.s32 %s475, %s476
      %s478 = smul.addr %s477, 4
      %s479 = scalar_lea.vmem %s1, %s478
      %s480 = sadd.s32 %s24, 1
      %s481 = smul.u32 %s480, 4
      %s482 = smul.u32 2, %s481
      %s483 = smul.u32 8, %s24
      %s484 = ssub.s32 18, %s483
      %p485 = scmp.lt.s32.totalorder %s484, 8
      %s486 = scalar_select %p485, %s484, 8
      %s487 = smul.u32 4, %s486
      %s488 = smul.u32 %s487, 3
      %p489 = scmp.lt.s32.totalorder %s23, 1
      %s490 = scalar_select %p489, %s23, 1
      %p491 = scmp.lt.s32.totalorder %s483, 17
      %s492 = scalar_select %p491, %s483, 17
      %s493 = smul.addr %s492, 3
      %s494 = smul.addr %s490, 54
      %s495 = sadd.s32 %s493, %s494
      %s496 = smul.addr %s495, 4
      %s497 = scalar_lea.vmem %s2, %s496
      %s498 = smul.u32 8, %s24
      %s499 = ssub.s32 18, %s498
      %p500 = scmp.lt.s32.totalorder %s499, 8
      %s501 = scalar_select %p500, %s499, 8
      %s502 = smul.u32 4, %s501
      %s503 = smul.u32 %s502, 3
      %s504 = sadd.s32 %s24, 1
      %s505 = smul.u32 %s504, 4
      %s506 = smul.u32 2, %s505
      %p507 = scmp.lt.s32.totalorder %s23, 1
      %s508 = scalar_select %p507, %s23, 1
      %p509 = scmp.lt.s32.totalorder %s506, 17
      %s510 = scalar_select %p509, %s506, 17
      %s511 = smul.addr %s510, 3
      %s512 = smul.addr %s508, 54
      %s513 = sadd.s32 %s511, %s512
      %s514 = smul.addr %s513, 4
      %s515 = scalar_lea.vmem %s3, %s514
      %s516 = sadd.s32 %s24, 1
      %s517 = smul.u32 %s516, 4
      %s518 = smul.u32 2, %s517
      %s519 = smul.u32 %s23, 2
      %s520 = sadd.s32 %s519, %s24
      %s521 = smul.u32 16, %s520
      %p522 = scmp.lt.s32.totalorder %s521, 63
      %s523 = scalar_select %p522, %s521, 63
      %s524 = smul.addr %s523, 8
      %s525 = scalar_lea.vmem %s6, %s524
      %s526 = smul.u32 %s23, 2
      %s527 = sadd.s32 %s526, %s24
      %s528 = smul.u32 16, %s527
      %p529 = scmp.lt.s32.totalorder %s23, 1
      %s530 = scalar_select %p529, %s23, 1
      %p531 = scmp.lt.s32.totalorder %s24, 1
      %s532 = scalar_select %p531, %s24, 1
      %s533 = smul.addr %s530, 2
      %s534 = sadd.s32 %s532, %s533
      %s535 = smul.addr %s534, 2
      %s536 = scalar_lea.vmem %s7, %s535
      %v538 = vld [vmem:[%s461] sm:$0xf]
      %v539 = vld [vmem:[%s461 + $0x4] sm:$0xf]
      %v540 = vld [vmem:[%s461 + $0x8] sm:$0x1]
      %v541 = vld [vmem:[%s461 + $0xc] sm:$0xf]
      %v542 = vld [vmem:[%s461 + $0x10] sm:$0xf]
      %v543 = vld [vmem:[%s461 + $0x14] sm:$0x1]
      %v544 = vld [vmem:[%s461 + $0x18] sm:$0xf]
      %v545 = vld [vmem:[%s461 + $0x1c] sm:$0xf]
      %v546 = vld [vmem:[%s461 + $0x20] sm:$0x1]
      %v547 = vld [vmem:[%s461 + $0x24] sm:$0xf]
      %v548 = vld [vmem:[%s461 + $0x28] sm:$0xf]
      %v549 = vld [vmem:[%s461 + $0x2c] sm:$0x1]
      %v550 = vld [vmem:[%s461 + $0x30] sm:$0xf]
      %v551 = vld [vmem:[%s461 + $0x34] sm:$0xf]
      %v552 = vld [vmem:[%s461 + $0x38] sm:$0x1]
      %v553 = vld [vmem:[%s461 + $0x3c] sm:$0xf]
      %v554 = vld [vmem:[%s461 + $0x40] sm:$0xf]
      %v555 = vld [vmem:[%s461 + $0x44] sm:$0x1]
      %v556 = vld [vmem:[%s461 + $0x48] sm:$0xf]
      %v557 = vld [vmem:[%s461 + $0x4c] sm:$0xf]
      %v558 = vld [vmem:[%s461 + $0x50] sm:$0x1]
      %v559 = vld [vmem:[%s461 + $0x54] sm:$0xf]
      %v560 = vld [vmem:[%s461 + $0x58] sm:$0xf]
      %v561 = vld [vmem:[%s461 + $0x5c] sm:$0x1]
      %v562 = vld [vmem:[%s479] sm:$0xf]
      %v563 = vld [vmem:[%s479 + $0x4] sm:$0xf]
      %v564 = vld [vmem:[%s479 + $0x8] sm:$0x1]
      %v565 = vld [vmem:[%s479 + $0xc] sm:$0xf]
      %v566 = vld [vmem:[%s479 + $0x10] sm:$0xf]
      %v567 = vld [vmem:[%s479 + $0x14] sm:$0x1]
      %v568 = vld [vmem:[%s497] sm:$0xf]
      %v569 = vld [vmem:[%s497 + $0x4] sm:$0xf]
      %v570 = vld [vmem:[%s497 + $0x8] sm:$0x1]
      %v571 = vld [vmem:[%s497 + $0xc] sm:$0xf]
      %v572 = vld [vmem:[%s497 + $0x10] sm:$0xf]
      %v573 = vld [vmem:[%s497 + $0x14] sm:$0x1]
      %v574 = vld [vmem:[%s497 + $0x18] sm:$0xf]
      %v575 = vld [vmem:[%s497 + $0x1c] sm:$0xf]
      %v576 = vld [vmem:[%s497 + $0x20] sm:$0x1]
      %v577 = vld [vmem:[%s497 + $0x24] sm:$0xf]
      %v578 = vld [vmem:[%s497 + $0x28] sm:$0xf]
      %v579 = vld [vmem:[%s497 + $0x2c] sm:$0x1]
      %v580 = vld [vmem:[%s497 + $0x30] sm:$0xf]
      %v581 = vld [vmem:[%s497 + $0x34] sm:$0xf]
      %v582 = vld [vmem:[%s497 + $0x38] sm:$0x1]
      %v583 = vld [vmem:[%s497 + $0x3c] sm:$0xf]
      %v584 = vld [vmem:[%s497 + $0x40] sm:$0xf]
      %v585 = vld [vmem:[%s497 + $0x44] sm:$0x1]
      %v586 = vld [vmem:[%s497 + $0x48] sm:$0xf]
      %v587 = vld [vmem:[%s497 + $0x4c] sm:$0xf]
      %v588 = vld [vmem:[%s497 + $0x50] sm:$0x1]
      %v589 = vld [vmem:[%s497 + $0x54] sm:$0xf]
      %v590 = vld [vmem:[%s497 + $0x58] sm:$0xf]
      %v591 = vld [vmem:[%s497 + $0x5c] sm:$0x1]
      %v592 = vld [vmem:[%s515] sm:$0xf]
      %v593 = vld [vmem:[%s515 + $0x4] sm:$0xf]
      %v594 = vld [vmem:[%s515 + $0x8] sm:$0x1]
      %v595 = vld [vmem:[%s515 + $0xc] sm:$0xf]
      %v596 = vld [vmem:[%s515 + $0x10] sm:$0xf]
      %v597 = vld [vmem:[%s515 + $0x14] sm:$0x1]
      %v628 = vunpack.c.l.b16 %v538
      %v629 = vunpack.c.l.b16 %v539
      %v630 = vunpack.c.l.b16 %v540
      %v631 = vunpack.c.l.b16 %v541
      %v632 = vunpack.c.l.b16 %v542
      %v633 = vunpack.c.l.b16 %v543
      %v634 = vunpack.c.l.b16 %v544
      %v635 = vunpack.c.l.b16 %v545
      %v636 = vunpack.c.l.b16 %v546
      %v637 = vunpack.c.l.b16 %v547
      %v638 = vunpack.c.l.b16 %v548
      %v639 = vunpack.c.l.b16 %v549
      %v640 = vunpack.c.l.b16 %v550
      %v641 = vunpack.c.l.b16 %v551
      %v642 = vunpack.c.l.b16 %v552
      %v643 = vunpack.c.l.b16 %v553
      %v644 = vunpack.c.l.b16 %v554
      %v645 = vunpack.c.l.b16 %v555
      %v646 = vunpack.c.l.b16 %v556
      %v647 = vunpack.c.l.b16 %v557
      %v648 = vunpack.c.l.b16 %v558
      %v649 = vunpack.c.l.b16 %v559
      %v650 = vunpack.c.l.b16 %v560
      %v651 = vunpack.c.l.b16 %v561
      %v652 = vunpack.c.l.b16 %v562
      %v653 = vunpack.c.l.b16 %v563
      %v654 = vunpack.c.l.b16 %v564
      %v655 = vunpack.c.l.b16 %v565
      %v656 = vunpack.c.l.b16 %v566
      %v657 = vunpack.c.l.b16 %v567
      %v658 = vpack.c.b16 %v629, %v628
      %v659 = vpack.c.b16 %v630, %v630
      %v660 = vpack.c.b16 %v632, %v631
      %v661 = vpack.c.b16 %v633, %v633
      %v662 = vpack.c.b16 %v635, %v634
      %v663 = vpack.c.b16 %v636, %v636
      %v664 = vpack.c.b16 %v638, %v637
      %v665 = vpack.c.b16 %v639, %v639
      %v666 = vpack.c.b16 %v641, %v640
      %v667 = vpack.c.b16 %v642, %v642
      %v668 = vpack.c.b16 %v644, %v643
      %v669 = vpack.c.b16 %v645, %v645
      %v670 = vpack.c.b16 %v647, %v646
      %v671 = vpack.c.b16 %v648, %v648
      %v672 = vpack.c.b16 %v650, %v649
      %v673 = vpack.c.b16 %v651, %v651
      %v674 = vpack.c.b16 %v653, %v652
      %v675 = vpack.c.b16 %v654, %v654
      %v676 = vpack.c.b16 %v656, %v655
      %v677 = vpack.c.b16 %v657, %v657
      %v708 = vunpack.c.l.b16 %v568
      %v709 = vunpack.c.l.b16 %v569
      %v710 = vunpack.c.l.b16 %v570
      %v711 = vunpack.c.l.b16 %v571
      %v712 = vunpack.c.l.b16 %v572
      %v713 = vunpack.c.l.b16 %v573
      %v714 = vunpack.c.l.b16 %v574
      %v715 = vunpack.c.l.b16 %v575
      %v716 = vunpack.c.l.b16 %v576
      %v717 = vunpack.c.l.b16 %v577
      %v718 = vunpack.c.l.b16 %v578
      %v719 = vunpack.c.l.b16 %v579
      %v720 = vunpack.c.l.b16 %v580
      %v721 = vunpack.c.l.b16 %v581
      %v722 = vunpack.c.l.b16 %v582
      %v723 = vunpack.c.l.b16 %v583
      %v724 = vunpack.c.l.b16 %v584
      %v725 = vunpack.c.l.b16 %v585
      %v726 = vunpack.c.l.b16 %v586
      %v727 = vunpack.c.l.b16 %v587
      %v728 = vunpack.c.l.b16 %v588
      %v729 = vunpack.c.l.b16 %v589
      %v730 = vunpack.c.l.b16 %v590
      %v731 = vunpack.c.l.b16 %v591
      %v732 = vunpack.c.l.b16 %v592
      %v733 = vunpack.c.l.b16 %v593
      %v734 = vunpack.c.l.b16 %v594
      %v735 = vunpack.c.l.b16 %v595
      %v736 = vunpack.c.l.b16 %v596
      %v737 = vunpack.c.l.b16 %v597
      %v738 = vpack.c.b16 %v709, %v708
      %v739 = vpack.c.b16 %v710, %v710
      %v740 = vpack.c.b16 %v712, %v711
      %v741 = vpack.c.b16 %v713, %v713
      %v742 = vpack.c.b16 %v715, %v714
      %v743 = vpack.c.b16 %v716, %v716
      %v744 = vpack.c.b16 %v718, %v717
      %v745 = vpack.c.b16 %v719, %v719
      %v746 = vpack.c.b16 %v721, %v720
      %v747 = vpack.c.b16 %v722, %v722
      %v748 = vpack.c.b16 %v724, %v723
      %v749 = vpack.c.b16 %v725, %v725
      %v750 = vpack.c.b16 %v727, %v726
      %v751 = vpack.c.b16 %v728, %v728
      %v752 = vpack.c.b16 %v730, %v729
      %v753 = vpack.c.b16 %v731, %v731
      %v754 = vpack.c.b16 %v733, %v732
      %v755 = vpack.c.b16 %v734, %v734
      %v756 = vpack.c.b16 %v736, %v735
      %v757 = vpack.c.b16 %v737, %v737
      %758 = vrot.lane.b32.xlu0 %v738, 4
      %v759 = vpop.permute.xlu0 %758
      %760 = vrot.lane.b32.xlu0 %v739, 4
      %v761 = vpop.permute.xlu0 %760
      %762 = vrot.lane.b32.xlu0 %v740, 4
      %v763 = vpop.permute.xlu0 %762
      %764 = vrot.lane.b32.xlu0 %v741, 4
      %v765 = vpop.permute.xlu0 %764
      %766 = vrot.lane.b32.xlu0 %v742, 4
      %v767 = vpop.permute.xlu0 %766
      %768 = vrot.lane.b32.xlu0 %v743, 4
      %v769 = vpop.permute.xlu0 %768
      %770 = vrot.lane.b32.xlu0 %v744, 4
      %v771 = vpop.permute.xlu0 %770
      %772 = vrot.lane.b32.xlu0 %v745, 4
      %v773 = vpop.permute.xlu0 %772
      %774 = vrot.lane.b32.xlu0 %v746, 4
      %v775 = vpop.permute.xlu0 %774
      %776 = vrot.lane.b32.xlu0 %v747, 4
      %v777 = vpop.permute.xlu0 %776
      %778 = vrot.lane.b32.xlu0 %v748, 4
      %v779 = vpop.permute.xlu0 %778
      %780 = vrot.lane.b32.xlu0 %v749, 4
      %v781 = vpop.permute.xlu0 %780
      %782 = vrot.lane.b32.xlu0 %v750, 4
      %v783 = vpop.permute.xlu0 %782
      %784 = vrot.lane.b32.xlu0 %v751, 4
      %v785 = vpop.permute.xlu0 %784
      %786 = vrot.lane.b32.xlu0 %v752, 4
      %v787 = vpop.permute.xlu0 %786
      %788 = vrot.lane.b32.xlu0 %v753, 4
      %v789 = vpop.permute.xlu0 %788
      %790 = vrot.lane.b32.xlu0 %v754, 4
      %v791 = vpop.permute.xlu0 %790
      %792 = vrot.lane.b32.xlu0 %v755, 4
      %v793 = vpop.permute.xlu0 %792
      %794 = vrot.lane.b32.xlu0 %v756, 4
      %v795 = vpop.permute.xlu0 %794
      %796 = vrot.lane.b32.xlu0 %v757, 4
      %v797 = vpop.permute.xlu0 %796
      %vm798 = vcmask 31744
      %v801 = vsel %vm798, %v658, %v759
      %v804 = vsel %vm798, %v659, %v761
      %v807 = vsel %vm798, %v660, %v763
      %v810 = vsel %vm798, %v661, %v765
      %v813 = vsel %vm798, %v662, %v767
      %v816 = vsel %vm798, %v663, %v769
      %v819 = vsel %vm798, %v664, %v771
      %v822 = vsel %vm798, %v665, %v773
      %v825 = vsel %vm798, %v666, %v775
      %v828 = vsel %vm798, %v667, %v777
      %v831 = vsel %vm798, %v668, %v779
      %v834 = vsel %vm798, %v669, %v781
      %v837 = vsel %vm798, %v670, %v783
      %v840 = vsel %vm798, %v671, %v785
      %v843 = vsel %vm798, %v672, %v787
      %v846 = vsel %vm798, %v673, %v789
      %v849 = vsel %vm798, %v674, %v791
      %v852 = vsel %vm798, %v675, %v793
      %v855 = vsel %vm798, %v676, %v795
      %v858 = vsel %vm798, %v677, %v797
      %vm859 = vsmask.f32 7424
      %v860 = vshrl.u32 %v801, 16
      %v862 = vshll.u32 %v801, 16
      %v864 = vrot.slane %v862, 1
      %v865 = vor.u32 %v860, %v864
      %v866 = vshll.u32 %v804, 16
      %v868 = vrot.slane %v866, 1
      %v869 = vsel %vm859, %v865, %v868
      %v870 = vshrl.u32 %v807, 16
      %v872 = vshll.u32 %v807, 16
      %v874 = vrot.slane %v872, 1
      %v875 = vor.u32 %v870, %v874
      %v876 = vshll.u32 %v810, 16
      %v878 = vrot.slane %v876, 1
      %v879 = vsel %vm859, %v875, %v878
      %v880 = vshrl.u32 %v813, 16
      %v882 = vshll.u32 %v813, 16
      %v884 = vrot.slane %v882, 1
      %v885 = vor.u32 %v880, %v884
      %v886 = vshll.u32 %v816, 16
      %v888 = vrot.slane %v886, 1
      %v889 = vsel %vm859, %v885, %v888
      %v890 = vshrl.u32 %v819, 16
      %v892 = vshll.u32 %v819, 16
      %v894 = vrot.slane %v892, 1
      %v895 = vor.u32 %v890, %v894
      %v896 = vshll.u32 %v822, 16
      %v898 = vrot.slane %v896, 1
      %v899 = vsel %vm859, %v895, %v898
      %v900 = vshrl.u32 %v825, 16
      %v902 = vshll.u32 %v825, 16
      %v904 = vrot.slane %v902, 1
      %v905 = vor.u32 %v900, %v904
      %v906 = vshll.u32 %v828, 16
      %v908 = vrot.slane %v906, 1
      %v909 = vsel %vm859, %v905, %v908
      %v910 = vshrl.u32 %v831, 16
      %v912 = vshll.u32 %v831, 16
      %v914 = vrot.slane %v912, 1
      %v915 = vor.u32 %v910, %v914
      %v916 = vshll.u32 %v834, 16
      %v918 = vrot.slane %v916, 1
      %v919 = vsel %vm859, %v915, %v918
      %v920 = vshrl.u32 %v837, 16
      %v922 = vshll.u32 %v837, 16
      %v924 = vrot.slane %v922, 1
      %v925 = vor.u32 %v920, %v924
      %v926 = vshll.u32 %v840, 16
      %v928 = vrot.slane %v926, 1
      %v929 = vsel %vm859, %v925, %v928
      %v930 = vshrl.u32 %v843, 16
      %v932 = vshll.u32 %v843, 16
      %v934 = vrot.slane %v932, 1
      %v935 = vor.u32 %v930, %v934
      %v936 = vshll.u32 %v846, 16
      %v938 = vrot.slane %v936, 1
      %v939 = vsel %vm859, %v935, %v938
      %v940 = vshrl.u32 %v849, 16
      %v942 = vshll.u32 %v849, 16
      %v944 = vrot.slane %v942, 1
      %v945 = vor.u32 %v940, %v944
      %v946 = vshll.u32 %v852, 16
      %v948 = vrot.slane %v946, 1
      %v949 = vsel %vm859, %v945, %v948
      %v950 = vshrl.u32 %v855, 16
      %v952 = vshll.u32 %v855, 16
      %v954 = vrot.slane %v952, 1
      %v955 = vor.u32 %v950, %v954
      %v956 = vshll.u32 %v858, 16
      %v958 = vrot.slane %v956, 1
      %v959 = vsel %vm859, %v955, %v958
      %960 = vrot.lane.b32.xlu0 %v869, 8
      %v961 = vpop.permute.xlu0 %960
      %962 = vrot.lane.b32.xlu0 %v879, 8
      %v963 = vpop.permute.xlu0 %962
      %964 = vrot.lane.b32.xlu0 %v889, 8
      %v965 = vpop.permute.xlu0 %964
      %966 = vrot.lane.b32.xlu0 %v899, 8
      %v967 = vpop.permute.xlu0 %966
      %968 = vrot.lane.b32.xlu0 %v909, 8
      %v969 = vpop.permute.xlu0 %968
      %970 = vrot.lane.b32.xlu0 %v919, 8
      %v971 = vpop.permute.xlu0 %970
      %972 = vrot.lane.b32.xlu0 %v929, 8
      %v973 = vpop.permute.xlu0 %972
      %974 = vrot.lane.b32.xlu0 %v939, 8
      %v975 = vpop.permute.xlu0 %974
      %976 = vrot.lane.b32.xlu0 %v949, 8
      %v977 = vpop.permute.xlu0 %976
      %978 = vrot.lane.b32.xlu0 %v959, 8
      %v979 = vpop.permute.xlu0 %978
      %vm1000 = vcmask 1046528
      %v1001 = vrot.slane %v801, 1
      %v1002 = vrot.slane %v804, 1
      %v1003 = vsel %vm1000, %v1001, %v1002
      %v1004 = vrot.slane %v807, 1
      %v1005 = vrot.slane %v810, 1
      %v1006 = vsel %vm1000, %v1004, %v1005
      %v1007 = vrot.slane %v813, 1
      %v1008 = vrot.slane %v816, 1
      %v1009 = vsel %vm1000, %v1007, %v1008
      %v1010 = vrot.slane %v819, 1
      %v1011 = vrot.slane %v822, 1
      %v1012 = vsel %vm1000, %v1010, %v1011
      %v1013 = vrot.slane %v825, 1
      %v1014 = vrot.slane %v828, 1
      %v1015 = vsel %vm1000, %v1013, %v1014
      %v1016 = vrot.slane %v831, 1
      %v1017 = vrot.slane %v834, 1
      %v1018 = vsel %vm1000, %v1016, %v1017
      %v1019 = vrot.slane %v837, 1
      %v1020 = vrot.slane %v840, 1
      %v1021 = vsel %vm1000, %v1019, %v1020
      %v1022 = vrot.slane %v843, 1
      %v1023 = vrot.slane %v846, 1
      %v1024 = vsel %vm1000, %v1022, %v1023
      %v1025 = vrot.slane %v849, 1
      %v1026 = vrot.slane %v852, 1
      %v1027 = vsel %vm1000, %v1025, %v1026
      %v1028 = vrot.slane %v855, 1
      %v1029 = vrot.slane %v858, 1
      %v1030 = vsel %vm1000, %v1028, %v1029
      %1031 = vrot.lane.b32.xlu0 %v1003, 16
      %v1032 = vpop.permute.xlu0 %1031
      %1033 = vrot.lane.b32.xlu0 %v1006, 16
      %v1034 = vpop.permute.xlu0 %1033
      %1035 = vrot.lane.b32.xlu0 %v1009, 16
      %v1036 = vpop.permute.xlu0 %1035
      %1037 = vrot.lane.b32.xlu0 %v1012, 16
      %v1038 = vpop.permute.xlu0 %1037
      %1039 = vrot.lane.b32.xlu0 %v1015, 16
      %v1040 = vpop.permute.xlu0 %1039
      %1041 = vrot.lane.b32.xlu0 %v1018, 16
      %v1042 = vpop.permute.xlu0 %1041
      %1043 = vrot.lane.b32.xlu0 %v1021, 16
      %v1044 = vpop.permute.xlu0 %1043
      %1045 = vrot.lane.b32.xlu0 %v1024, 16
      %v1046 = vpop.permute.xlu0 %1045
      %1047 = vrot.lane.b32.xlu0 %v1027, 16
      %v1048 = vpop.permute.xlu0 %1047
      %1049 = vrot.lane.b32.xlu0 %v1030, 16
      %v1050 = vpop.permute.xlu0 %1049
      %vm1051 = vcmask 64512
      %v1053 = vsel %vm1051, %v801, %v961
      %v1055 = vsel %vm1051, %v807, %v963
      %v1057 = vsel %vm1051, %v813, %v965
      %v1059 = vsel %vm1051, %v819, %v967
      %v1061 = vsel %vm1051, %v825, %v969
      %v1063 = vsel %vm1051, %v831, %v971
      %v1065 = vsel %vm1051, %v837, %v973
      %v1067 = vsel %vm1051, %v843, %v975
      %v1069 = vsel %vm1051, %v849, %v977
      %v1071 = vsel %vm1051, %v855, %v979
      %vm1072 = vcmask 130048
      %v1074 = vsel %vm1072, %v1053, %v1032
      %v1076 = vsel %vm1072, %v1055, %v1034
      %v1078 = vsel %vm1072, %v1057, %v1036
      %v1080 = vsel %vm1072, %v1059, %v1038
      %v1082 = vsel %vm1072, %v1061, %v1040
      %v1084 = vsel %vm1072, %v1063, %v1042
      %v1086 = vsel %vm1072, %v1065, %v1044
      %v1088 = vsel %vm1072, %v1067, %v1046
      %v1090 = vsel %vm1072, %v1069, %v1048
      %v1092 = vsel %vm1072, %v1071, %v1050
      %1101 = vrot.lane.b32.xlu0 %v1076, 24
      %v1102 = vpop.permute.xlu0 %1101
      %1103 = vrot.lane.b32.xlu0 %v1078, 24
      %v1104 = vpop.permute.xlu0 %1103
      %1105 = vrot.lane.b32.xlu0 %v1080, 24
      %v1106 = vpop.permute.xlu0 %1105
      %1107 = vrot.lane.b32.xlu0 %v1082, 24
      %v1108 = vpop.permute.xlu0 %1107
      %1109 = vrot.lane.b32.xlu0 %v1084, 24
      %v1110 = vpop.permute.xlu0 %1109
      %1111 = vrot.lane.b32.xlu0 %v1086, 24
      %v1112 = vpop.permute.xlu0 %1111
      %1113 = vrot.lane.b32.xlu0 %v1088, 24
      %v1114 = vpop.permute.xlu0 %1113
      %1115 = vrot.lane.b32.xlu0 %v1090, 24
      %v1116 = vpop.permute.xlu0 %1115
      %1118 = vrot.lane.b32.xlu0 %v1078, 48
      %v1119 = vpop.permute.xlu0 %1118
      %1120 = vrot.lane.b32.xlu0 %v1080, 48
      %v1121 = vpop.permute.xlu0 %1120
      %1122 = vrot.lane.b32.xlu0 %v1082, 48
      %v1123 = vpop.permute.xlu0 %1122
      %1124 = vrot.lane.b32.xlu0 %v1084, 48
      %v1125 = vpop.permute.xlu0 %1124
      %1126 = vrot.lane.b32.xlu0 %v1086, 48
      %v1127 = vpop.permute.xlu0 %1126
      %1128 = vrot.lane.b32.xlu0 %v1088, 48
      %v1129 = vpop.permute.xlu0 %1128
      %1130 = vrot.lane.b32.xlu0 %v1090, 48
      %v1131 = vpop.permute.xlu0 %1130
      %1132 = vrot.lane.b32.xlu0 %v1092, 48
      %v1133 = vpop.permute.xlu0 %1132
      %vm1134 = vcmask 195584
      %v1136 = vsel %vm1134, %v1074, %v1102
      %v1138 = vsel %vm1134, %v1076, %v1104
      %v1140 = vsel %vm1134, %v1078, %v1106
      %v1142 = vsel %vm1134, %v1080, %v1108
      %v1144 = vsel %vm1134, %v1082, %v1110
      %v1146 = vsel %vm1134, %v1084, %v1112
      %v1148 = vsel %vm1134, %v1086, %v1114
      %v1150 = vsel %vm1134, %v1088, %v1116
      %vm1151 = vcmask 392192
      %v1153 = vsel %vm1151, %v1136, %v1119
      %v1155 = vsel %vm1151, %v1138, %v1121
      %v1157 = vsel %vm1151, %v1140, %v1123
      %v1159 = vsel %vm1151, %v1142, %v1125
      %v1161 = vsel %vm1151, %v1144, %v1127
      %v1163 = vsel %vm1151, %v1146, %v1129
      %v1165 = vsel %vm1151, %v1148, %v1131
      %v1167 = vsel %vm1151, %v1150, %v1133
      %v1168 = vld [vmem:[%s4] sm:$0xf]
      %v1169 = vld [vmem:[%s4 + $0x4] sm:$0xf]
      %v1170 = vld [vmem:[%s4 + $0x8] sm:$0xf]
      %v1171 = vld [vmem:[%s4 + $0xc] sm:$0xf]
      %v1172 = vld [vmem:[%s4 + $0x10] sm:$0xf]
      %v1173 = vld [vmem:[%s4 + $0x14] sm:$0xf]
      %v1174 = vld [vmem:[%s4 + $0x18] sm:$0xf]
      %v1175 = vld [vmem:[%s4 + $0x1c] sm:$0xf]
      %v1176 = vld [vmem:[%s4 + $0x20] sm:$0xf]
      %v1177 = vld [vmem:[%s5] sm:$0x1]
      %v1179 = vperm.slane %v1177, 0
      %v1190 = vunpack.c.l.b16 %v1168
      %v1191 = vunpack.c.l.b16 %v1169
      %v1192 = vunpack.c.l.b16 %v1170
      %v1193 = vunpack.c.l.b16 %v1171
      %v1194 = vunpack.c.l.b16 %v1172
      %v1195 = vunpack.c.l.b16 %v1173
      %v1196 = vunpack.c.l.b16 %v1174
      %v1197 = vunpack.c.l.b16 %v1175
      %v1198 = vunpack.c.l.b16 %v1176
      %v1199 = vpack.c.b16 %v1191, %v1190
      %v1200 = vpack.c.b16 %v1193, %v1192
      %v1201 = vpack.c.b16 %v1195, %v1194
      %v1202 = vpack.c.b16 %v1197, %v1196
      %v1203 = vpack.c.b16 %v1198, %v1198
      %vm1208 = vcmask 588800
      %v1209 = vsel %vm1208, %v1153, 0
      %v1211 = vsel %vm1208, %v1155, 0
      %v1213 = vsel %vm1208, %v1157, 0
      %v1215 = vsel %vm1208, %v1159, 0
      %v1217 = vsel %vm1208, %v1161, 0
      %v1219 = vsel %vm1208, %v1163, 0
      %v1221 = vsel %vm1208, %v1165, 0
      %v1223 = vsel %vm1208, %v1167, 0
      %vm1225 = vcmask 1043456
      %v1227 = vsel %vm1225, %v1203, 0
      %1229 = vmatpush.bf16.msra.mxu0 0
      %1230 = vmatpush.bf16.msra.mxu0 0
      %1231 = vmatpush.bf16.msra.mxu0 0
      %1232 = vmatpush.bf16.msra.mxu0 %v1227
      %1233 = vmatpush.bf16.msra.mxu0 %v1202
      %1234 = vmatpush.bf16.msra.mxu0 %v1201
      %1235 = vmatpush.bf16.msra.mxu0 %v1200
      %1236 = vmatpush.bf16.msra.mxu0 %v1199
      %1237 = vmatmul.bf16.gmra.mxu0 %v1209
      %v1238 = vpop.f32.mrf.mxu0
      %v1239 = vadd.f32 %v1179, %v1238
      %v1240 = vpop.f32.mrf.mxu0
      %v1241 = vadd.f32 %v1179, %v1240
      %1242 = vmatmul.bf16.gmra.mxu0 %v1211
      %v1243 = vpop.f32.mrf.mxu0
      %v1244 = vadd.f32 %v1179, %v1243
      %v1245 = vpop.f32.mrf.mxu0
      %v1246 = vadd.f32 %v1179, %v1245
      %1247 = vmatmul.bf16.gmra.mxu0 %v1213
      %v1248 = vpop.f32.mrf.mxu0
      %v1249 = vadd.f32 %v1179, %v1248
      %v1250 = vpop.f32.mrf.mxu0
      %v1251 = vadd.f32 %v1179, %v1250
      %1252 = vmatmul.bf16.gmra.mxu0 %v1215
      %v1253 = vpop.f32.mrf.mxu0
      %v1254 = vadd.f32 %v1179, %v1253
      %v1255 = vpop.f32.mrf.mxu0
      %v1256 = vadd.f32 %v1179, %v1255
      %1257 = vmatmul.bf16.gmra.mxu0 %v1217
      %v1258 = vpop.f32.mrf.mxu0
      %v1259 = vadd.f32 %v1179, %v1258
      %v1260 = vpop.f32.mrf.mxu0
      %v1261 = vadd.f32 %v1179, %v1260
      %1262 = vmatmul.bf16.gmra.mxu0 %v1219
      %v1263 = vpop.f32.mrf.mxu0
      %v1264 = vadd.f32 %v1179, %v1263
      %v1265 = vpop.f32.mrf.mxu0
      %v1266 = vadd.f32 %v1179, %v1265
      %1267 = vmatmul.bf16.gmra.mxu0 %v1221
      %v1268 = vpop.f32.mrf.mxu0
      %v1269 = vadd.f32 %v1179, %v1268
      %v1270 = vpop.f32.mrf.mxu0
      %v1271 = vadd.f32 %v1179, %v1270
      %1272 = vmatmul.bf16.gmra.mxu0 %v1223
      %v1273 = vpop.f32.mrf.mxu0
      %v1274 = vadd.f32 %v1179, %v1273
      %v1275 = vpop.f32.mrf.mxu0
      %v1276 = vadd.f32 %v1179, %v1275
      %1277 = vdwg.mxu0
      %1278 = vst.msk [vmem:[%s525] sm:$0xff] %vm798, %v1239
      %1279 = vst.msk [vmem:[%s525 + $0x8] sm:$0xff] %vm798, %v1241
      %1280 = vst.msk [vmem:[%s525 + $0x10] sm:$0xff] %vm798, %v1244
      %1281 = vst.msk [vmem:[%s525 + $0x18] sm:$0xff] %vm798, %v1246
      %1282 = vst.msk [vmem:[%s525 + $0x20] sm:$0xff] %vm798, %v1249
      %1283 = vst.msk [vmem:[%s525 + $0x28] sm:$0xff] %vm798, %v1251
      %1284 = vst.msk [vmem:[%s525 + $0x30] sm:$0xff] %vm798, %v1254
      %1285 = vst.msk [vmem:[%s525 + $0x38] sm:$0xff] %vm798, %v1256
      %1286 = vst.msk [vmem:[%s525 + $0x40] sm:$0xff] %vm798, %v1259
      %1287 = vst.msk [vmem:[%s525 + $0x48] sm:$0xff] %vm798, %v1261
      %1288 = vst.msk [vmem:[%s525 + $0x50] sm:$0xff] %vm798, %v1264
      %1289 = vst.msk [vmem:[%s525 + $0x58] sm:$0xff] %vm798, %v1266
      %1290 = vst.msk [vmem:[%s525 + $0x60] sm:$0xff] %vm798, %v1269
      %1291 = vst.msk [vmem:[%s525 + $0x68] sm:$0xff] %vm798, %v1271
      %1292 = vst.msk [vmem:[%s525 + $0x70] sm:$0xff] %vm798, %v1274
      %1293 = vst.msk [vmem:[%s525 + $0x78] sm:$0xff] %vm798, %v1276
      %v1294 = vsel %vm798, %v1239, 0.0
      %v1295 = vsel %vm798, %v1241, 0.0
      %v1296 = vadd.f32 %v1294, %v1295
      %v1297 = vsel %vm798, %v1244, 0.0
      %v1298 = vadd.f32 %v1296, %v1297
      %v1299 = vsel %vm798, %v1246, 0.0
      %v1300 = vadd.f32 %v1298, %v1299
      %v1301 = vsel %vm798, %v1249, 0.0
      %v1302 = vadd.f32 %v1300, %v1301
      %v1303 = vsel %vm798, %v1251, 0.0
      %v1304 = vadd.f32 %v1302, %v1303
      %v1305 = vsel %vm798, %v1254, 0.0
      %v1306 = vadd.f32 %v1304, %v1305
      %v1307 = vsel %vm798, %v1256, 0.0
      %v1308 = vadd.f32 %v1306, %v1307
      %v1309 = vsel %vm798, %v1259, 0.0
      %v1310 = vadd.f32 %v1308, %v1309
      %v1311 = vsel %vm798, %v1261, 0.0
      %v1312 = vadd.f32 %v1310, %v1311
      %v1313 = vsel %vm798, %v1264, 0.0
      %v1314 = vadd.f32 %v1312, %v1313
      %v1315 = vsel %vm798, %v1266, 0.0
      %v1316 = vadd.f32 %v1314, %v1315
      %v1317 = vsel %vm798, %v1269, 0.0
      %v1318 = vadd.f32 %v1316, %v1317
      %v1319 = vsel %vm798, %v1271, 0.0
      %v1320 = vadd.f32 %v1318, %v1319
      %v1321 = vsel %vm798, %v1274, 0.0
      %v1322 = vadd.f32 %v1320, %v1321
      %v1323 = vsel %vm798, %v1276, 0.0
      %v1324 = vadd.f32 %v1322, %v1323
      %v1325 = vrot.slane %v1324, 4
      %v1326 = vadd.f32 %v1324, %v1325
      %v1327 = vrot.slane %v1326, 2
      %v1328 = vadd.f32 %v1326, %v1327
      %v1329 = vrot.slane %v1328, 1
      %v1330 = vadd.f32 %v1328, %v1329
      %v1331 = vmul.f32 %v1239, %v1239
      %v1332 = vmul.f32 %v1241, %v1241
      %v1333 = vmul.f32 %v1244, %v1244
      %v1334 = vmul.f32 %v1246, %v1246
      %v1335 = vmul.f32 %v1249, %v1249
      %v1336 = vmul.f32 %v1251, %v1251
      %v1337 = vmul.f32 %v1254, %v1254
      %v1338 = vmul.f32 %v1256, %v1256
      %v1339 = vmul.f32 %v1259, %v1259
      %v1340 = vmul.f32 %v1261, %v1261
      %v1341 = vmul.f32 %v1264, %v1264
      %v1342 = vmul.f32 %v1266, %v1266
      %v1343 = vmul.f32 %v1269, %v1269
      %v1344 = vmul.f32 %v1271, %v1271
      %v1345 = vmul.f32 %v1274, %v1274
      %v1346 = vmul.f32 %v1276, %v1276
      %v1347 = vsel %vm798, %v1331, 0.0
      %v1348 = vsel %vm798, %v1332, 0.0
      %v1349 = vadd.f32 %v1347, %v1348
      %v1350 = vsel %vm798, %v1333, 0.0
      %v1351 = vadd.f32 %v1349, %v1350
      %v1352 = vsel %vm798, %v1334, 0.0
      %v1353 = vadd.f32 %v1351, %v1352
      %v1354 = vsel %vm798, %v1335, 0.0
      %v1355 = vadd.f32 %v1353, %v1354
      %v1356 = vsel %vm798, %v1336, 0.0
      %v1357 = vadd.f32 %v1355, %v1356
      %v1358 = vsel %vm798, %v1337, 0.0
      %v1359 = vadd.f32 %v1357, %v1358
      %v1360 = vsel %vm798, %v1338, 0.0
      %v1361 = vadd.f32 %v1359, %v1360
      %v1362 = vsel %vm798, %v1339, 0.0
      %v1363 = vadd.f32 %v1361, %v1362
      %v1364 = vsel %vm798, %v1340, 0.0
      %v1365 = vadd.f32 %v1363, %v1364
      %v1366 = vsel %vm798, %v1341, 0.0
      %v1367 = vadd.f32 %v1365, %v1366
      %v1368 = vsel %vm798, %v1342, 0.0
      %v1369 = vadd.f32 %v1367, %v1368
      %v1370 = vsel %vm798, %v1343, 0.0
      %v1371 = vadd.f32 %v1369, %v1370
      %v1372 = vsel %vm798, %v1344, 0.0
      %v1373 = vadd.f32 %v1371, %v1372
      %v1374 = vsel %vm798, %v1345, 0.0
      %v1375 = vadd.f32 %v1373, %v1374
      %v1376 = vsel %vm798, %v1346, 0.0
      %v1377 = vadd.f32 %v1375, %v1376
      %v1378 = vrot.slane %v1377, 4
      %v1379 = vadd.f32 %v1377, %v1378
      %v1380 = vrot.slane %v1379, 2
      %v1381 = vadd.f32 %v1379, %v1380
      %v1382 = vrot.slane %v1381, 1
      %v1383 = vadd.f32 %v1381, %v1382
      %vm1384 = vcmask 1040384
      %v1385 = vsel %vm1384, %v1330, %v1383
      %vm1386 = vcmask 25600
      %1387 = vst.msk [vmem:[%s536] sm:$0x3] %vm1386, %v1385
      %s1388 = smul.u32 %s23, 2
      %s1389 = sadd.s32 %s1388, %s24
      %s1390 = smul.u32 16, %s1389
      %p1391 = scmp.lt.s32.totalorder %s1390, 63
      %s1392 = scalar_select %p1391, %s1390, 63
      %s1393 = smul.addr %s1392, 8
      %s1394 = scalar_lea.vmem %s6, %s1393
      %p1395 = scmp.lt.s32.totalorder %s23, 1
      %s1396 = scalar_select %p1395, %s23, 1
      %p1397 = scmp.lt.s32.totalorder %s24, 1
      %s1398 = scalar_select %p1397, %s24, 1
      %s1399 = smul.addr %s1396, 2
      %s1400 = sadd.s32 %s1398, %s1399
      %s1401 = smul.addr %s1400, 2
      %s1402 = scalar_lea.vmem %s7, %s1401
      // Predicated region
      $region45: #{decoder_forward.6} parent=43 // pred_check
        %p1403 = pneg %p215
      $region46: #{decoder_forward.6} parent=43 // pred_check_branch
        %1405 = sbr.rel (%p1403) target = $region48
      $region47: #{decoder_forward.6} parent=43 // pred_region
        %s1406 = smul.u32 %s23, 2
        %s1407 = sadd.s32 %s1406, %s24
        %s1408 = smul.u32 16, %s1407
      $region48: #{decoder_forward.6} parent=43 // pred_fallthru
        _
      // Predicated region
      $region49: #{decoder_forward.6} parent=43 // pred_check
        %p1409 = pneg %p243
      $region50: #{decoder_forward.6} parent=43 // pred_check_branch
        %1411 = sbr.rel (%p1409) target = $region52
      $region51: #{decoder_forward.6} parent=43 // pred_region
        _
      $region52: #{decoder_forward.6} parent=43 // pred_fallthru
        _
    $region44: #{decoder_forward.6} parent=5 // pred_fallthru
      _
    %p1412 = scmp.le.s32.totalorder 2, %s14
    // Predicated region
    $region53: #{decoder_forward.6} parent=5 // pred_check
      %p1413 = pneg %p1412
    $region54: #{decoder_forward.6} parent=5 // pred_check_branch
      %1415 = sbr.rel (%p1413) target = $region56
    $region55: #{decoder_forward.6} parent=5 // pred_region
      %s1416 = ssub.s32 %s14, 2
      // Predicated region
      $region57: #{decoder_forward.6} parent=55 // pred_check
        %p1417 = pneg %p221
      $region58: #{decoder_forward.6} parent=55 // pred_check_branch
        %1419 = sbr.rel (%p1417) target = $region60
      $region59: #{decoder_forward.6} parent=55 // pred_region
        %s1420 = smul.u32 %s25, 2
        %s1421 = sadd.s32 %s1420, %s26
        %s1422 = smul.u32 16, %s1421
        %p1423 = scmp.lt.s32.totalorder %s1422, 63
        %s1424 = scalar_select %p1423, %s1422, 63
        %s1425 = smul.addr %s1424, 8
        %s1426 = scalar_lea.vmem %s6, %s1425
      $region60: #{decoder_forward.6} parent=55 // pred_fallthru
        _
      // Predicated region
      $region61: #{decoder_forward.6} parent=55 // pred_check
        %p1427 = pneg %p249
      $region62: #{decoder_forward.6} parent=55 // pred_check_branch
        %1429 = sbr.rel (%p1427) target = $region64
      $region63: #{decoder_forward.6} parent=55 // pred_region
        %p1430 = scmp.lt.s32.totalorder %s25, 1
        %s1431 = scalar_select %p1430, %s25, 1
        %p1432 = scmp.lt.s32.totalorder %s26, 1
        %s1433 = scalar_select %p1432, %s26, 1
        %s1434 = smul.addr %s1431, 2
        %s1435 = sadd.s32 %s1433, %s1434
        %s1436 = smul.addr %s1435, 2
        %s1437 = scalar_lea.vmem %s7, %s1436
      $region64: #{decoder_forward.6} parent=55 // pred_fallthru
        _
    $region56: #{decoder_forward.6} parent=5 // pred_fallthru
      _
  $region6: #{decoder_forward.6} parent=0 // loop_footer
    %s18 = sadd.s32 1, %s14
  $region7: #{decoder_forward.6} parent=0 // loop_footer_branch
    %13 = sbr.rel target = $region3
  $region8: #{decoder_forward.6} parent=0 // loop_exit
    _

</llo_original>
